<compile_context>
chip_gen: v7x
topology: tpu7x:2x2x1
jax: 0.10.0
libtpu: 0.0.40
codegen_flags: <defaults>
</compile_context>

<pallas_src>
import functools

import jax
import jax.numpy as jnp
from jax.experimental import pallas as pl
from jax.experimental.pallas import tpu as pltpu


def _round_up(x, m):
    return ((x + m - 1) // m) * m


# ---------------------------------------------------------------------------
# Kernel bodies
# ---------------------------------------------------------------------------

def _gru_layer(cur, h_prev, w_x, w_h, b_x, b_hn, hp, mxu_dtype):
    """One GRUCell step (torch.nn.GRUCell semantics), gate blocks Hp-lane aligned.

    cur, h_prev: (B, Hp) f32
    w_x, w_h:    (Hp, 3Hp) gate columns [r | z | n] (each block Hp wide, lane-aligned)
    b_x:         (1, 3Hp) f32 = [b_ir + b_hr | b_iz + b_hz | b_in]
    b_hn:        (1, Hp)  f32 = b_hn
    Two accumulating MXU dots instead of a lane-offset concat; all slices are free views.
    """
    gx = jnp.dot(cur.astype(mxu_dtype), w_x, preferred_element_type=jnp.float32) + b_x
    gh = jnp.dot(h_prev.astype(mxu_dtype), w_h, preferred_element_type=jnp.float32)
    r = jax.nn.sigmoid(gx[:, 0:hp] + gh[:, 0:hp])
    z = jax.nn.sigmoid(gx[:, hp:2 * hp] + gh[:, hp:2 * hp])
    n = jnp.tanh(gx[:, 2 * hp:3 * hp] + r * (gh[:, 2 * hp:3 * hp] + b_hn))
    return (1.0 - z) * n + z * h_prev


def _textmodel_kernel(n_layers, hp, mxu_dtype,
                      x_ref, h_ref,
                      emb_w_ref, emb_b_ref,
                      wx_ref, wh_ref, bx_ref, bhn_ref,
                      logw_ref, logb_ref,
                      logits_ref, newh_ref):
    """Single forward step; every operand is VMEM-resident (tiny footprint)."""
    x = x_ref[...].astype(mxu_dtype)                                       # (B, Ip)
    cur = jnp.dot(x, emb_w_ref[...], preferred_element_type=jnp.float32) + emb_b_ref[...]
    out_sum = jnp.zeros_like(cur)
    for l in range(n_layers):                    # static loop; n_layers small & constant
        h_prev = h_ref[l]                        # read before the (aliased) write below
        cur = _gru_layer(cur, h_prev, wx_ref[l], wh_ref[l], bx_ref[l], bhn_ref[l],
                         hp, mxu_dtype)
        # TODO(synk): nn.Dropout is identity in eval mode; training-mode dropout not implemented.
        newh_ref[l] = cur
        out_sum = out_sum + cur
    logits_ref[...] = (jnp.dot(out_sum.astype(mxu_dtype), logw_ref[...],
                               preferred_element_type=jnp.float32) + logb_ref[...])


def _textmodel_seq_kernel(n_layers, hp, mxu_dtype,
                          x_ref, h0_ref,
                          emb_w_ref, emb_b_ref,
                          wx_ref, wh_ref, bx_ref, bhn_ref,
                          logw_ref, logb_ref,
                          logits_ref, newh_ref,
                          outsum_ref):
    """One chunk of Tc time steps per grid iteration.

    Weights: constant index maps (fetched once). Hidden state: carried across chunks in the
    VMEM-resident newh output block. Embedding/logits: batched over the whole chunk so only
    the small per-layer GRU dots sit on the serial recurrence.
    """
    c = pl.program_id(0)

    @pl.when(c == 0)
    def _():
        newh_ref[...] = h0_ref[...]

    tc, b, ip = x_ref.shape

    # Batched embedding for the whole chunk (off the recurrent critical path).
    x = x_ref[...].reshape(tc * b, ip).astype(mxu_dtype)
    emb = (jnp.dot(x, emb_w_ref[...], preferred_element_type=jnp.float32)
           + emb_b_ref[...]).reshape(tc, b, hp)

    # Recurrence over the chunk (static, fully unrolled).
    h = [newh_ref[l] for l in range(n_layers)]
    for t in range(tc):
        cur = emb[t]
        step_sum = jnp.zeros_like(cur)
        for l in range(n_layers):
            cur = _gru_layer(cur, h[l], wx_ref[l], wh_ref[l], bx_ref[l], bhn_ref[l],
                             hp, mxu_dtype)
            # TODO(synk): training-mode dropout not implemented (identity in eval mode).
            h[l] = cur
            step_sum = step_sum + cur
        outsum_ref[t] = step_sum
    for l in range(n_layers):
        newh_ref[l] = h[l]

    # Batched logits for the whole chunk: one tall GEMM instead of Tc tiny ones.
    osum = outsum_ref[...].reshape(tc * b, hp).astype(mxu_dtype)
    logits = jnp.dot(osum, logw_ref[...], preferred_element_type=jnp.float32) + logb_ref[...]
    logits_ref[...] = logits.reshape(tc, b, logits_ref.shape[-1])


# ---------------------------------------------------------------------------
# Wrappers
# ---------------------------------------------------------------------------

def textmodel_forward(x, hiddens, params):
    """Single step. x: (B, I) f32; hiddens: (L, B, H) f32; params: pack_params() output."""
    B, I = x.shape
    L, _, H = hiddens.shape
    ip, hp = params["i_pad"], params["h_pad"]
    mxu_dtype = params["emb_w"].dtype

    x_p = jnp.zeros((B, ip), jnp.float32).at[:, :I].set(x)
    h_p = jnp.zeros((L, B, hp), jnp.float32).at[:, :, :H].set(hiddens)

    operands = (x_p, h_p, params["emb_w"], params["emb_b"], params["w_x"], params["w_h"],
                params["b_x"], params["b_hn"], params["log_w"], params["log_b"])
    flops = 2 * B * (ip * hp + L * 2 * hp * 3 * hp + hp * ip)
    transcendentals = B * L * 3 * hp
    bytes_accessed = (sum(int(a.size) * a.dtype.itemsize for a in operands)
                      + 4 * (B * ip + L * B * hp))

    kernel = functools.partial(_textmodel_kernel, L, hp, mxu_dtype)
    logits_p, newh_p = pl.pallas_call(
        kernel,
        out_shape=(jax.ShapeDtypeStruct((B, ip), jnp.float32),
                   jax.ShapeDtypeStruct((L, B, hp), jnp.float32)),
        in_specs=[pl.BlockSpec(memory_space=pltpu.MemorySpace.VMEM) for _ in operands],
        out_specs=(pl.BlockSpec(memory_space=pltpu.MemorySpace.VMEM),
                   pl.BlockSpec(memory_space=pltpu.MemorySpace.VMEM)),
        input_output_aliases={1: 1},     # hiddens buffer reused for new_hiddens
        compiler_params=pltpu.CompilerParams(vmem_limit_bytes=32 * 1024 * 1024),
        cost_estimate=pl.CostEstimate(flops=flops, transcendentals=transcendentals,
                                      bytes_accessed=bytes_accessed),
    )(*operands)
    return logits_p[:, :I], newh_p[:, :, :H]


def textmodel_forward_seq(xs, hiddens, params, max_chunk=8):
    """T steps fused into one kernel, chunked over time.

    xs: (T, B, I) f32; hiddens: (L, B, H) f32.
    Returns (logits (T, B, I), new_h (L, B, H)).
    """
    T, B, I = xs.shape
    L, _, H = hiddens.shape
    ip, hp = params["i_pad"], params["h_pad"]
    mxu_dtype = params["emb_w"].dtype

    tc = min(max_chunk, T)
    while T % tc:                        # largest chunk size that divides T
        tc -= 1

    xs_p = jnp.zeros((T, B, ip), jnp.float32).at[:, :, :I].set(xs)
    h_p = jnp.zeros((L, B, hp), jnp.float32).at[:, :, :H].set(hiddens)

    operands = (xs_p, h_p, params["emb_w"], params["emb_b"], params["w_x"], params["w_h"],
                params["b_x"], params["b_hn"], params["log_w"], params["log_b"])

    def _resident(a):
        # Full-array block, constant index map: fetched once, stays VMEM-resident.
        nd = a.ndim
        return pl.BlockSpec(a.shape, lambda c, _nd=nd: (0,) * _nd)

    in_specs = ([pl.BlockSpec((tc, B, ip), lambda c: (c, 0, 0))]
                + [_resident(a) for a in operands[1:]])
    out_specs = (pl.BlockSpec((tc, B, ip), lambda c: (c, 0, 0)),
                 pl.BlockSpec((L, B, hp), lambda c: (0, 0, 0)))

    flops = 2 * B * T * (ip * hp + L * 2 * hp * 3 * hp + hp * ip)
    transcendentals = B * T * L * 3 * hp
    bytes_accessed = (sum(int(a.size) * a.dtype.itemsize for a in operands)
                      + 4 * (T * B * ip + L * B * hp))

    kernel = functools.partial(_textmodel_seq_kernel, L, hp, mxu_dtype)
    # TODO(synk): for realistic sizes on v7x, add a leading batch-tile "parallel" grid axis
    # (2 TensorCores) and tile the vocab dim of log_w once Hp*Ip*itemsize nears the 64 MiB
    # VMEM budget; at these shapes the resident footprint is ~100 KiB so neither is needed.
    logits_p, newh_p = pl.pallas_call(
        kernel,
        grid=(T // tc,),
        out_shape=(jax.ShapeDtypeStruct((T, B, ip), jnp.float32),
                   jax.ShapeDtypeStruct((L, B, hp), jnp.float32)),
        in_specs=in_specs,
        out_specs=out_specs,
        scratch_shapes=[pltpu.VMEM((tc, B, hp), jnp.float32)],
        input_output_aliases={1: 1},     # hiddens buffer reused for new_hiddens
        compiler_params=pltpu.CompilerParams(
            dimension_semantics=("arbitrary",),   # time chunks carry hidden state
            vmem_limit_bytes=32 * 1024 * 1024),
        cost_estimate=pl.CostEstimate(flops=flops, transcendentals=transcendentals,
                                      bytes_accessed=bytes_accessed),
    )(*operands)
    return logits_p[:, :, :I], newh_p[:, :, :H]


# ---------------------------------------------------------------------------
# Parameters (raw torch-like layout + packed, padded kernel layout)
# ---------------------------------------------------------------------------

def make_params(key, input_size, hidden_size, n_layers):
    """Raw parameters matching the PyTorch module (pre-transposed so matmuls are x @ W).

    nn.Linear(I, H).weight is (H, I) -> stored transposed as (I, H).
    nn.GRUCell weight_ih/_hh are (3H, H) -> stored as (L, 3, H_in, H_out), gate order (r, z, n).
    """
    ks = jax.random.split(key, 8)
    scale = 0.1
    I, H, L = input_size, hidden_size, n_layers
    return {
        "emb_w": scale * jax.random.normal(ks[0], (I, H), jnp.float32),
        "emb_b": scale * jax.random.normal(ks[1], (1, H), jnp.float32),
        "w_ih":  scale * jax.random.normal(ks[2], (L, 3, H, H), jnp.float32),
        "w_hh":  scale * jax.random.normal(ks[3], (L, 3, H, H), jnp.float32),
        "b_ih":  scale * jax.random.normal(ks[4], (L, 3, 1, H), jnp.float32),
        "b_hh":  scale * jax.random.normal(ks[5], (L, 3, 1, H), jnp.float32),
        "log_w": scale * jax.random.normal(ks[6], (H, I), jnp.float32),
        "log_b": scale * jax.random.normal(ks[7], (1, I), jnp.float32),
    }


def pack_params(raw, mxu_dtype):
    """Pack raw params into the padded, gate-aligned kernel layout.

    All feature dims are zero-padded to 128-lane multiples (H -> Hp, I -> Ip) so every gate
    slice is lane-aligned and every store is unmasked. Zero padding is inert: padded weight
    rows/cols are zero, so padded hidden columns stay exactly zero throughout the recurrence.
    w_x/w_h hold the input/hidden gate weights with columns [r | z | n] (each Hp wide);
    b_x pre-sums the r/z input+hidden biases; b_hn stays separate (n = tanh(gx_n + r*gh_n)).
    MXU operands (weights) are cast to mxu_dtype (bf16 recommended on all generations);
    biases stay f32 and are added after the f32-accumulated dot.
    """
    w_ih, w_hh = raw["w_ih"], raw["w_hh"]
    b_ih, b_hh = raw["b_ih"], raw["b_hh"]
    L, _, H, _ = w_ih.shape
    I = raw["log_w"].shape[1]
    hp = _round_up(H, 128)
    ip = _round_up(I, 128)

    emb_w = jnp.zeros((ip, hp), jnp.float32).at[:I, :H].set(raw["emb_w"])
    emb_b = jnp.zeros((1, hp), jnp.float32).at[:, :H].set(raw["emb_b"])

    w_x = jnp.zeros((L, hp, 3 * hp), jnp.float32)
    w_h = jnp.zeros((L, hp, 3 * hp), jnp.float32)
    for g in range(3):
        w_x = w_x.at[:, :H, g * hp:g * hp + H].set(w_ih[:, g])
        w_h = w_h.at[:, :H, g * hp:g * hp + H].set(w_hh[:, g])
    b_x = jnp.zeros((L, 1, 3 * hp), jnp.float32)
    b_x = b_x.at[:, :, 0 * hp:0 * hp + H].set(b_ih[:, 0] + b_hh[:, 0])
    b_x = b_x.at[:, :, 1 * hp:1 * hp + H].set(b_ih[:, 1] + b_hh[:, 1])
    b_x = b_x.at[:, :, 2 * hp:2 * hp + H].set(b_ih[:, 2])
    b_hn = jnp.zeros((L, 1, hp), jnp.float32).at[:, :, :H].set(b_hh[:, 2])

    log_w = jnp.zeros((hp, ip), jnp.float32).at[:H, :I].set(raw["log_w"])
    log_b = jnp.zeros((1, ip), jnp.float32).at[:, :I].set(raw["log_b"])

    return {
        "emb_w": emb_w.astype(mxu_dtype),
        "emb_b": emb_b,
        "w_x": w_x.astype(mxu_dtype),
        "w_h": w_h.astype(mxu_dtype),
        "b_x": b_x,
        "b_hn": b_hn,
        "log_w": log_w.astype(mxu_dtype),
        "log_b": log_b,
        "input_size": I,
        "hidden_size": H,
        "i_pad": ip,
        "h_pad": hp,
    }


def init_hidden(n_layers, batch_size, hidden_size):
    """Matches TextModel.init_hidden (zero-initialised hidden_inits)."""
    return jnp.zeros((n_layers, batch_size, hidden_size), jnp.float32)


# ---------------------------------------------------------------------------
# Pure-JAX reference (mirrors the PyTorch forward, f32 throughout)
# ---------------------------------------------------------------------------

def reference_forward(x, hiddens, raw):
    cur = x @ raw["emb_w"] + raw["emb_b"]
    L = hiddens.shape[0]
    new_h = []
    for l in range(L):
        h = hiddens[l]
        r = jax.nn.sigmoid(cur @ raw["w_ih"][l, 0] + raw["b_ih"][l, 0]
                           + h @ raw["w_hh"][l, 0] + raw["b_hh"][l, 0])
        z = jax.nn.sigmoid(cur @ raw["w_ih"][l, 1] + raw["b_ih"][l, 1]
                           + h @ raw["w_hh"][l, 1] + raw["b_hh"][l, 1])
        n = jnp.tanh(cur @ raw["w_ih"][l, 2] + raw["b_ih"][l, 2]
                     + r * (h @ raw["w_hh"][l, 2] + raw["b_hh"][l, 2]))
        cur = (1.0 - z) * n + z * h
        new_h.append(cur)
    out = sum(new_h)
    logits = out @ raw["log_w"] + raw["log_b"]
    return logits, jnp.stack(new_h)


# ---------------------------------------------------------------------------
# Test
# ---------------------------------------------------------------------------

if __name__ == "__main__":
    INPUT_SIZE = 32
    HIDDEN_SIZE = 32
    N_LAYERS = 2
    BATCH = 8
    SEQ_LEN = 8

    key = jax.random.PRNGKey(0)
    k_x, k_h, k_p, k_xs = jax.random.split(key, 4)

    x = jax.random.normal(k_x, (BATCH, INPUT_SIZE), jnp.float32)
    hiddens = jax.random.normal(k_h, (N_LAYERS, BATCH, HIDDEN_SIZE), jnp.float32)
    xs = jax.random.normal(k_xs, (SEQ_LEN, BATCH, INPUT_SIZE), jnp.float32)
    raw = make_params(k_p, INPUT_SIZE, HIDDEN_SIZE, N_LAYERS)

    # References (computed up front, independent of kernel buffers).
    ref_logits, ref_newh = reference_forward(x, hiddens, raw)
    h_ref = hiddens
    ref_seq_logits = []
    for t in range(SEQ_LEN):
        lg, h_ref = reference_forward(xs[t], h_ref, raw)
        ref_seq_logits.append(lg)
    ref_seq_logits = jnp.stack(ref_seq_logits)

    # 1) f32 MXU operands: tight correctness check.
    params_f32 = pack_params(raw, jnp.float32)
    logits, newh = jax.block_until_ready(textmodel_forward(x, hiddens, params_f32))
    assert jnp.allclose(logits, ref_logits, atol=5e-3, rtol=5e-3)
    assert jnp.allclose(newh, ref_newh, atol=5e-3, rtol=5e-3)

    # 2) bf16 MXU operands (recommended default on v5e/v6e/v7x), state math f32: relaxed check.
    params_bf16 = pack_params(raw, jnp.bfloat16)
    logits_bf, newh_bf = jax.block_until_ready(textmodel_forward(x, hiddens, params_bf16))
    assert jnp.allclose(logits_bf, ref_logits, atol=1e-1, rtol=1e-1)
    assert jnp.allclose(newh_bf, ref_newh, atol=1e-1, rtol=1e-1)

    # 3) Time-chunked sequence variant (grid over chunks of 4 steps): tight f32 check.
    seq_logits, seq_newh = jax.block_until_ready(
        textmodel_forward_seq(xs, hiddens, params_f32, max_chunk=4))
    assert jnp.allclose(seq_logits, ref_seq_logits, atol=5e-3, rtol=5e-3)
    assert jnp.allclose(seq_newh, h_ref, atol=5e-3, rtol=5e-3)

    print("KERNEL_OK")
</pallas_src>

<mosaic_0001>
module attributes {stable_mosaic.version = 11 : i64} {
  func.func @_textmodel_kernel(%arg0: memref<8x128xf32, #tpu.memory_space<vmem>>, %arg1: memref<2x8x128xf32, #tpu.memory_space<vmem>>, %arg2: memref<128x128xf32, #tpu.memory_space<vmem>>, %arg3: memref<1x128xf32, #tpu.memory_space<vmem>>, %arg4: memref<2x128x384xf32, #tpu.memory_space<vmem>>, %arg5: memref<2x128x384xf32, #tpu.memory_space<vmem>>, %arg6: memref<2x1x384xf32, #tpu.memory_space<vmem>>, %arg7: memref<2x1x128xf32, #tpu.memory_space<vmem>>, %arg8: memref<128x128xf32, #tpu.memory_space<vmem>>, %arg9: memref<1x128xf32, #tpu.memory_space<vmem>>, %arg10: memref<8x128xf32, #tpu.memory_space<vmem>>, %arg11: memref<2x8x128xf32, #tpu.memory_space<vmem>>) attributes {dimension_semantics = [], scalar_prefetch = 0 : i64, scratch_operands = 0 : i64, tpu.core_type = #tpu.core_type<tc>} {
    %c0 = arith.constant 0 : index
    %c0_0 = arith.constant 0 : index
    %0 = vector.load %arg0[%c0, %c0_0] : memref<8x128xf32, #tpu.memory_space<vmem>>, vector<8x128xf32>
    %c0_1 = arith.constant 0 : index
    %c0_2 = arith.constant 0 : index
    %1 = vector.load %arg2[%c0_1, %c0_2] : memref<128x128xf32, #tpu.memory_space<vmem>>, vector<128x128xf32>
    %cst = arith.constant dense<0.000000e+00> : vector<8x128xf32>
    %2 = tpu.matmul %0, %1, %cst {dimension_numbers = #tpu.dot_dimension_numbers<[1], [0], [0], [1], [0, 0, 1, 1], [], []>} : vector<8x128xf32>, vector<128x128xf32>, vector<8x128xf32> -> vector<8x128xf32>
    %c0_3 = arith.constant 0 : index
    %c0_4 = arith.constant 0 : index
    %3 = vector.load %arg3[%c0_3, %c0_4] : memref<1x128xf32, #tpu.memory_space<vmem>>, vector<1x128xf32>
    %4 = vector.broadcast %3 : vector<1x128xf32> to vector<8x128xf32>
    %5 = arith.addf %2, %4 : vector<8x128xf32>
    %cst_5 = arith.constant 0.000000e+00 : f32
    %6 = vector.broadcast %cst_5 : f32 to vector<8x128xf32>
    %c0_6 = arith.constant 0 : index
    %c0_7 = arith.constant 0 : index
    %c0_8 = arith.constant 0 : index
    %7 = vector.load %arg1[%c0_6, %c0_7, %c0_8] : memref<2x8x128xf32, #tpu.memory_space<vmem>>, vector<1x8x128xf32>
    %8 = vector.shape_cast %7 : vector<1x8x128xf32> to vector<8x128xf32>
    %c0_9 = arith.constant 0 : index
    %c0_10 = arith.constant 0 : index
    %c0_11 = arith.constant 0 : index
    %9 = vector.load %arg4[%c0_9, %c0_10, %c0_11] : memref<2x128x384xf32, #tpu.memory_space<vmem>>, vector<1x128x384xf32>
    %10 = vector.shape_cast %9 : vector<1x128x384xf32> to vector<128x384xf32>
    %c0_12 = arith.constant 0 : index
    %c0_13 = arith.constant 0 : index
    %c0_14 = arith.constant 0 : index
    %11 = vector.load %arg5[%c0_12, %c0_13, %c0_14] : memref<2x128x384xf32, #tpu.memory_space<vmem>>, vector<1x128x384xf32>
    %12 = vector.shape_cast %11 : vector<1x128x384xf32> to vector<128x384xf32>
    %c0_15 = arith.constant 0 : index
    %c0_16 = arith.constant 0 : index
    %c0_17 = arith.constant 0 : index
    %13 = vector.load %arg6[%c0_15, %c0_16, %c0_17] : memref<2x1x384xf32, #tpu.memory_space<vmem>>, vector<1x1x384xf32>
    %14 = vector.shape_cast %13 : vector<1x1x384xf32> to vector<1x384xf32>
    %c0_18 = arith.constant 0 : index
    %c0_19 = arith.constant 0 : index
    %c0_20 = arith.constant 0 : index
    %15 = vector.load %arg7[%c0_18, %c0_19, %c0_20] : memref<2x1x128xf32, #tpu.memory_space<vmem>>, vector<1x1x128xf32>
    %16 = vector.shape_cast %15 : vector<1x1x128xf32> to vector<1x128xf32>
    %cst_21 = arith.constant dense<0.000000e+00> : vector<8x384xf32>
    %17 = tpu.matmul %5, %10, %cst_21 {dimension_numbers = #tpu.dot_dimension_numbers<[1], [0], [0], [1], [0, 0, 1, 1], [], []>} : vector<8x128xf32>, vector<128x384xf32>, vector<8x384xf32> -> vector<8x384xf32>
    %18 = vector.broadcast %14 : vector<1x384xf32> to vector<8x384xf32>
    %19 = arith.addf %17, %18 : vector<8x384xf32>
    %cst_22 = arith.constant dense<0.000000e+00> : vector<8x384xf32>
    %20 = tpu.matmul %8, %12, %cst_22 {dimension_numbers = #tpu.dot_dimension_numbers<[1], [0], [0], [1], [0, 0, 1, 1], [], []>} : vector<8x128xf32>, vector<128x384xf32>, vector<8x384xf32> -> vector<8x384xf32>
    %21 = vector.extract_strided_slice %19 {offsets = [0, 0], sizes = [8, 128], strides = [1, 1]} : vector<8x384xf32> to vector<8x128xf32>
    %22 = vector.extract_strided_slice %20 {offsets = [0, 0], sizes = [8, 128], strides = [1, 1]} : vector<8x384xf32> to vector<8x128xf32>
    %23 = arith.addf %21, %22 : vector<8x128xf32>
    %24 = arith.negf %23 : vector<8x128xf32>
    %25 = math.exp %24 : vector<8x128xf32>
    %cst_23 = arith.constant 1.000000e+00 : f32
    %26 = vector.broadcast %cst_23 : f32 to vector<8x128xf32>
    %27 = arith.addf %26, %25 : vector<8x128xf32>
    %28 = arith.divf %26, %27 : vector<8x128xf32>
    %29 = vector.extract_strided_slice %19 {offsets = [0, 128], sizes = [8, 128], strides = [1, 1]} : vector<8x384xf32> to vector<8x128xf32>
    %30 = vector.extract_strided_slice %20 {offsets = [0, 128], sizes = [8, 128], strides = [1, 1]} : vector<8x384xf32> to vector<8x128xf32>
    %31 = arith.addf %29, %30 : vector<8x128xf32>
    %32 = arith.negf %31 : vector<8x128xf32>
    %33 = math.exp %32 : vector<8x128xf32>
    %cst_24 = arith.constant 1.000000e+00 : f32
    %34 = vector.broadcast %cst_24 : f32 to vector<8x128xf32>
    %35 = arith.addf %34, %33 : vector<8x128xf32>
    %36 = arith.divf %34, %35 : vector<8x128xf32>
    %37 = vector.extract_strided_slice %19 {offsets = [0, 256], sizes = [8, 128], strides = [1, 1]} : vector<8x384xf32> to vector<8x128xf32>
    %38 = vector.extract_strided_slice %20 {offsets = [0, 256], sizes = [8, 128], strides = [1, 1]} : vector<8x384xf32> to vector<8x128xf32>
    %39 = vector.broadcast %16 : vector<1x128xf32> to vector<8x128xf32>
    %40 = arith.addf %38, %39 : vector<8x128xf32>
    %41 = arith.mulf %28, %40 : vector<8x128xf32>
    %42 = arith.addf %37, %41 : vector<8x128xf32>
    %43 = math.tanh %42 : vector<8x128xf32>
    %cst_25 = arith.constant 1.000000e+00 : f32
    %44 = vector.broadcast %cst_25 : f32 to vector<8x128xf32>
    %45 = arith.subf %44, %36 : vector<8x128xf32>
    %46 = arith.mulf %45, %43 : vector<8x128xf32>
    %47 = arith.mulf %36, %8 : vector<8x128xf32>
    %48 = arith.addf %46, %47 : vector<8x128xf32>
    %c0_26 = arith.constant 0 : index
    %c0_27 = arith.constant 0 : index
    %c0_28 = arith.constant 0 : index
    %49 = vector.load %arg11[%c0_26, %c0_27, %c0_28] : memref<2x8x128xf32, #tpu.memory_space<vmem>>, vector<1x8x128xf32>
    %50 = vector.shape_cast %49 : vector<1x8x128xf32> to vector<8x128xf32>
    %51 = vector.shape_cast %48 : vector<8x128xf32> to vector<1x8x128xf32>
    tpu.vector_store %arg11[%c0_26, %c0_27, %c0_28], %51 {strides = array<i32>} : memref<2x8x128xf32, #tpu.memory_space<vmem>>, vector<1x8x128xf32>,
    %52 = arith.addf %6, %48 : vector<8x128xf32>
    %c1 = arith.constant 1 : index
    %c0_29 = arith.constant 0 : index
    %c0_30 = arith.constant 0 : index
    %53 = vector.load %arg1[%c1, %c0_29, %c0_30] : memref<2x8x128xf32, #tpu.memory_space<vmem>>, vector<1x8x128xf32>
    %54 = vector.shape_cast %53 : vector<1x8x128xf32> to vector<8x128xf32>
    %c1_31 = arith.constant 1 : index
    %c0_32 = arith.constant 0 : index
    %c0_33 = arith.constant 0 : index
    %55 = vector.load %arg4[%c1_31, %c0_32, %c0_33] : memref<2x128x384xf32, #tpu.memory_space<vmem>>, vector<1x128x384xf32>
    %56 = vector.shape_cast %55 : vector<1x128x384xf32> to vector<128x384xf32>
    %c1_34 = arith.constant 1 : index
    %c0_35 = arith.constant 0 : index
    %c0_36 = arith.constant 0 : index
    %57 = vector.load %arg5[%c1_34, %c0_35, %c0_36] : memref<2x128x384xf32, #tpu.memory_space<vmem>>, vector<1x128x384xf32>
    %58 = vector.shape_cast %57 : vector<1x128x384xf32> to vector<128x384xf32>
    %c1_37 = arith.constant 1 : index
    %c0_38 = arith.constant 0 : index
    %c0_39 = arith.constant 0 : index
    %59 = vector.load %arg6[%c1_37, %c0_38, %c0_39] : memref<2x1x384xf32, #tpu.memory_space<vmem>>, vector<1x1x384xf32>
    %60 = vector.shape_cast %59 : vector<1x1x384xf32> to vector<1x384xf32>
    %c1_40 = arith.constant 1 : index
    %c0_41 = arith.constant 0 : index
    %c0_42 = arith.constant 0 : index
    %61 = vector.load %arg7[%c1_40, %c0_41, %c0_42] : memref<2x1x128xf32, #tpu.memory_space<vmem>>, vector<1x1x128xf32>
    %62 = vector.shape_cast %61 : vector<1x1x128xf32> to vector<1x128xf32>
    %cst_43 = arith.constant dense<0.000000e+00> : vector<8x384xf32>
    %63 = tpu.matmul %48, %56, %cst_43 {dimension_numbers = #tpu.dot_dimension_numbers<[1], [0], [0], [1], [0, 0, 1, 1], [], []>} : vector<8x128xf32>, vector<128x384xf32>, vector<8x384xf32> -> vector<8x384xf32>
    %64 = vector.broadcast %60 : vector<1x384xf32> to vector<8x384xf32>
    %65 = arith.addf %63, %64 : vector<8x384xf32>
    %cst_44 = arith.constant dense<0.000000e+00> : vector<8x384xf32>
    %66 = tpu.matmul %54, %58, %cst_44 {dimension_numbers = #tpu.dot_dimension_numbers<[1], [0], [0], [1], [0, 0, 1, 1], [], []>} : vector<8x128xf32>, vector<128x384xf32>, vector<8x384xf32> -> vector<8x384xf32>
    %67 = vector.extract_strided_slice %65 {offsets = [0, 0], sizes = [8, 128], strides = [1, 1]} : vector<8x384xf32> to vector<8x128xf32>
    %68 = vector.extract_strided_slice %66 {offsets = [0, 0], sizes = [8, 128], strides = [1, 1]} : vector<8x384xf32> to vector<8x128xf32>
    %69 = arith.addf %67, %68 : vector<8x128xf32>
    %70 = arith.negf %69 : vector<8x128xf32>
    %71 = math.exp %70 : vector<8x128xf32>
    %cst_45 = arith.constant 1.000000e+00 : f32
    %72 = vector.broadcast %cst_45 : f32 to vector<8x128xf32>
    %73 = arith.addf %72, %71 : vector<8x128xf32>
    %74 = arith.divf %72, %73 : vector<8x128xf32>
    %75 = vector.extract_strided_slice %65 {offsets = [0, 128], sizes = [8, 128], strides = [1, 1]} : vector<8x384xf32> to vector<8x128xf32>
    %76 = vector.extract_strided_slice %66 {offsets = [0, 128], sizes = [8, 128], strides = [1, 1]} : vector<8x384xf32> to vector<8x128xf32>
    %77 = arith.addf %75, %76 : vector<8x128xf32>
    %78 = arith.negf %77 : vector<8x128xf32>
    %79 = math.exp %78 : vector<8x128xf32>
    %cst_46 = arith.constant 1.000000e+00 : f32
    %80 = vector.broadcast %cst_46 : f32 to vector<8x128xf32>
    %81 = arith.addf %80, %79 : vector<8x128xf32>
    %82 = arith.divf %80, %81 : vector<8x128xf32>
    %83 = vector.extract_strided_slice %65 {offsets = [0, 256], sizes = [8, 128], strides = [1, 1]} : vector<8x384xf32> to vector<8x128xf32>
    %84 = vector.extract_strided_slice %66 {offsets = [0, 256], sizes = [8, 128], strides = [1, 1]} : vector<8x384xf32> to vector<8x128xf32>
    %85 = vector.broadcast %62 : vector<1x128xf32> to vector<8x128xf32>
    %86 = arith.addf %84, %85 : vector<8x128xf32>
    %87 = arith.mulf %74, %86 : vector<8x128xf32>
    %88 = arith.addf %83, %87 : vector<8x128xf32>
    %89 = math.tanh %88 : vector<8x128xf32>
    %cst_47 = arith.constant 1.000000e+00 : f32
    %90 = vector.broadcast %cst_47 : f32 to vector<8x128xf32>
    %91 = arith.subf %90, %82 : vector<8x128xf32>
    %92 = arith.mulf %91, %89 : vector<8x128xf32>
    %93 = arith.mulf %82, %54 : vector<8x128xf32>
    %94 = arith.addf %92, %93 : vector<8x128xf32>
    %c1_48 = arith.constant 1 : index
    %c0_49 = arith.constant 0 : index
    %c0_50 = arith.constant 0 : index
    %95 = vector.load %arg11[%c1_48, %c0_49, %c0_50] : memref<2x8x128xf32, #tpu.memory_space<vmem>>, vector<1x8x128xf32>
    %96 = vector.shape_cast %95 : vector<1x8x128xf32> to vector<8x128xf32>
    %97 = vector.shape_cast %94 : vector<8x128xf32> to vector<1x8x128xf32>
    tpu.vector_store %arg11[%c1_48, %c0_49, %c0_50], %97 {strides = array<i32>} : memref<2x8x128xf32, #tpu.memory_space<vmem>>, vector<1x8x128xf32>,
    %98 = arith.addf %52, %94 : vector<8x128xf32>
    %c0_51 = arith.constant 0 : index
    %c0_52 = arith.constant 0 : index
    %99 = vector.load %arg8[%c0_51, %c0_52] : memref<128x128xf32, #tpu.memory_space<vmem>>, vector<128x128xf32>
    %cst_53 = arith.constant dense<0.000000e+00> : vector<8x128xf32>
    %100 = tpu.matmul %98, %99, %cst_53 {dimension_numbers = #tpu.dot_dimension_numbers<[1], [0], [0], [1], [0, 0, 1, 1], [], []>} : vector<8x128xf32>, vector<128x128xf32>, vector<8x128xf32> -> vector<8x128xf32>
    %c0_54 = arith.constant 0 : index
    %c0_55 = arith.constant 0 : index
    %101 = vector.load %arg9[%c0_54, %c0_55] : memref<1x128xf32, #tpu.memory_space<vmem>>, vector<1x128xf32>
    %102 = vector.broadcast %101 : vector<1x128xf32> to vector<8x128xf32>
    %103 = arith.addf %100, %102 : vector<8x128xf32>
    %c0_56 = arith.constant 0 : index
    %c0_57 = arith.constant 0 : index
    %104 = vector.load %arg10[%c0_56, %c0_57] : memref<8x128xf32, #tpu.memory_space<vmem>>, vector<8x128xf32>
    tpu.vector_store %arg10[%c0_56, %c0_57], %103 {strides = array<i32>} : memref<8x128xf32, #tpu.memory_space<vmem>>, vector<8x128xf32>,
    return
  }
}

</mosaic_0001>

<llo_original>
// kernel: tpu_custom_call.1
$region0: #{tpu_custom_call.1}
  #allocation0 [shape = 'u32[]', space=smem, size = 0x4, offset = 0x4, fixed_abs, tag = 'smem constant byte address 0x4 - core index']
  #allocation1 [shape = 'u32[144,128]{1,0:T(1,128)}', space=vmem, size = 0x12000, scoped, tag = 'internal scratch']
  %s0 = inlined_call_operand.vmem [shape: f32[8,128], index: 0, kind: input, shape index: {}]
  %s1 = inlined_call_operand.hbm [shape: f32[2,8,128], index: 1, kind: input, shape index: {}, may-alias: {1,11}]
  %s2 = inlined_call_operand.hbm [shape: f32[128,128], index: 2, kind: input, shape index: {}]
  %s3 = inlined_call_operand.vmem [shape: f32[1,128], index: 3, kind: input, shape index: {}]
  %s4 = inlined_call_operand.hbm [shape: f32[2,128,384], index: 4, kind: input, shape index: {}]
  %s5 = inlined_call_operand.hbm [shape: f32[2,128,384], index: 5, kind: input, shape index: {}]
  %s6 = inlined_call_operand.vmem [shape: f32[2,1,384], index: 6, kind: input, shape index: {}]
  %s7 = inlined_call_operand.vmem [shape: f32[2,1,128], index: 7, kind: input, shape index: {}]
  %s8 = inlined_call_operand.hbm [shape: f32[128,128], index: 8, kind: input, shape index: {}]
  %s9 = inlined_call_operand.vmem [shape: f32[1,128], index: 9, kind: input, shape index: {}]
  %s10 = inlined_call_operand.hbm [shape: f32[8,128], index: 10, kind: output, shape index: {0}]
  %s11 = inlined_call_operand.hbm [shape: f32[2,8,128], index: 11, kind: output, shape index: {1}, may-alias: {1,11}]
  %12 = xla_tuple %s10, %s11
  %s13 = sld [smem:[#allocation0]]
  $region78: #{tpu_custom_call.1} parent=0
    _
  %s15 = ssub.s32 1, %s13
  %s16 = scalar_select 0, %s15, %s13
  $region1: #{tpu_custom_call.1} parent=0
    #allocation2 [shape = 'u8[8192]{0}', space=vmem, size = 0x2000, scoped, tag = 'input window, operand 1, single buffered']
    #allocation3 [shape = 's32[1]{0}', space=sflag, size = 0x4, scoped, tag = 'scoped memory for tpu_custom_call.1']
    #allocation4 [shape = 's32[1]{0}', space=sflag, size = 0x4, scoped, tag = 'scoped memory for tpu_custom_call.1']
    #allocation5 [shape = 'u8[65536]{0}', space=vmem, size = 0x10000, scoped, tag = 'input window, operand 2, single buffered']
    #allocation6 [shape = 's32[1]{0}', space=sflag, size = 0x4, scoped, tag = 'scoped memory for tpu_custom_call.1']
    #allocation7 [shape = 'u8[393216]{0}', space=vmem, size = 0x60000, scoped, tag = 'input window, operand 4, single buffered']
    #allocation8 [shape = 'u8[393216]{0}', space=vmem, size = 0x60000, scoped, tag = 'input window, operand 5, single buffered']
    #allocation9 [shape = 's32[1]{0}', space=sflag, size = 0x4, scoped, tag = 'scoped memory for tpu_custom_call.1']
    #allocation10 [shape = 'u8[65536]{0}', space=vmem, size = 0x10000, scoped, tag = 'input window, operand 8, single buffered']
    #allocation11 [shape = 'u8[4096]{0}', space=vmem, size = 0x1000, scoped, tag = 'output window, operand 0, single buffered']
    #allocation12 [shape = 'u8[8192]{0}', space=vmem, size = 0x2000, scoped, tag = 'output window, operand 1, single buffered']
    #allocation13 [shape = 's32[1]{0}', space=sflag, size = 0x4, scoped, tag = 'scoped memory for tpu_custom_call.1']
    %17 = vsyncpa [#allocation3], 0
    %18 = vsyncpa [#allocation6], 0
    %19 = vsyncpa [#allocation9], 0
    %20 = vsyncpa [#allocation4], 0
    %21 = vsyncpa [#allocation13], 0
    // Predicated region
    $region2: #{tpu_custom_call.1} parent=1 // pred_check
      _
    $region3: #{tpu_custom_call.1} parent=1 // pred_check_branch
      %23 = sbr.rel (0) target = $region5
    $region4: #{tpu_custom_call.1} parent=1 // pred_region
      _
    $region5: #{tpu_custom_call.1} parent=1 // pred_fallthru
      _
    // Predicated region
    $region6: #{tpu_custom_call.1} parent=1 // pred_check
      _
    $region7: #{tpu_custom_call.1} parent=1 // pred_check_branch
      %25 = sbr.rel (0) target = $region9
    $region8: #{tpu_custom_call.1} parent=1 // pred_region
      %s27 = ssub.s32 256, 256
      %28 = vsyncadd [#allocation3], %s27
      %s29 = sshll.u32 [#allocation2], 4
      %s30 = int_to_ptr.vmem [resolvable:$true] %s29
      %35 = dma.hbm_to_vmem [thread:$0]  %s1, 256, %s30, [#allocation3], 128, 128, 8
    $region9: #{tpu_custom_call.1} parent=1 // pred_fallthru
      _
    // Predicated region
    $region10: #{tpu_custom_call.1} parent=1 // pred_check
      _
    $region11: #{tpu_custom_call.1} parent=1 // pred_check_branch
      %37 = sbr.rel (0) target = $region13
    $region12: #{tpu_custom_call.1} parent=1 // pred_region
      %s39 = ssub.s32 2048, 2048
      %40 = vsyncadd [#allocation6], %s39
      %s41 = sshll.u32 [#allocation5], 4
      %s42 = int_to_ptr.vmem [resolvable:$true] %s41
      %47 = dma.hbm_to_vmem [thread:$0]  %s2, 2048, %s42, [#allocation6], 128, 128, 8
    $region13: #{tpu_custom_call.1} parent=1 // pred_fallthru
      _
    // Predicated region
    $region14: #{tpu_custom_call.1} parent=1 // pred_check
      _
    $region15: #{tpu_custom_call.1} parent=1 // pred_check_branch
      %49 = sbr.rel (0) target = $region17
    $region16: #{tpu_custom_call.1} parent=1 // pred_region
      _
    $region17: #{tpu_custom_call.1} parent=1 // pred_fallthru
      _
    // Predicated region
    $region18: #{tpu_custom_call.1} parent=1 // pred_check
      _
    $region19: #{tpu_custom_call.1} parent=1 // pred_check_branch
      %51 = sbr.rel (0) target = $region21
    $region20: #{tpu_custom_call.1} parent=1 // pred_region
      %s53 = ssub.s32 12288, 12288
      %54 = vsyncadd [#allocation6], %s53
      %s55 = sshll.u32 [#allocation7], 4
      %s56 = int_to_ptr.vmem [resolvable:$true] %s55
      %61 = dma.hbm_to_vmem [thread:$0]  %s4, 12288, %s56, [#allocation6], 384, 384, 24
    $region21: #{tpu_custom_call.1} parent=1 // pred_fallthru
      _
    // Predicated region
    $region22: #{tpu_custom_call.1} parent=1 // pred_check
      _
    $region23: #{tpu_custom_call.1} parent=1 // pred_check_branch
      %63 = sbr.rel (0) target = $region25
    $region24: #{tpu_custom_call.1} parent=1 // pred_region
      %s65 = ssub.s32 12288, 12288
      %66 = vsyncadd [#allocation9], %s65
      %s67 = sshll.u32 [#allocation8], 4
      %s68 = int_to_ptr.vmem [resolvable:$true] %s67
      %73 = dma.hbm_to_vmem [thread:$0]  %s5, 12288, %s68, [#allocation9], 384, 384, 24
    $region25: #{tpu_custom_call.1} parent=1 // pred_fallthru
      _
    // Predicated region
    $region26: #{tpu_custom_call.1} parent=1 // pred_check
      _
    $region27: #{tpu_custom_call.1} parent=1 // pred_check_branch
      %75 = sbr.rel (0) target = $region29
    $region28: #{tpu_custom_call.1} parent=1 // pred_region
      _
    $region29: #{tpu_custom_call.1} parent=1 // pred_fallthru
      _
    // Predicated region
    $region30: #{tpu_custom_call.1} parent=1 // pred_check
      _
    $region31: #{tpu_custom_call.1} parent=1 // pred_check_branch
      %77 = sbr.rel (0) target = $region33
    $region32: #{tpu_custom_call.1} parent=1 // pred_region
      _
    $region33: #{tpu_custom_call.1} parent=1 // pred_fallthru
      _
    // Predicated region
    $region34: #{tpu_custom_call.1} parent=1 // pred_check
      _
    $region35: #{tpu_custom_call.1} parent=1 // pred_check_branch
      %79 = sbr.rel (0) target = $region37
    $region36: #{tpu_custom_call.1} parent=1 // pred_region
      %s81 = ssub.s32 2048, 2048
      %82 = vsyncadd [#allocation9], %s81
      %s83 = sshll.u32 [#allocation10], 4
      %s84 = int_to_ptr.vmem [resolvable:$true] %s83
      %89 = dma.hbm_to_vmem [thread:$0]  %s8, 2048, %s84, [#allocation9], 128, 128, 8
    $region37: #{tpu_custom_call.1} parent=1 // pred_fallthru
      _
    // Predicated region
    $region38: #{tpu_custom_call.1} parent=1 // pred_check
      _
    $region39: #{tpu_custom_call.1} parent=1 // pred_check_branch
      %91 = sbr.rel (0) target = $region41
    $region40: #{tpu_custom_call.1} parent=1 // pred_region
      _
    $region41: #{tpu_custom_call.1} parent=1 // pred_fallthru
      _
    // Predicated region
    $region42: #{tpu_custom_call.1} parent=1 // pred_check
      _
    $region43: #{tpu_custom_call.1} parent=1 // pred_check_branch
      %93 = sbr.rel (0) target = $region45
    $region44: #{tpu_custom_call.1} parent=1 // pred_region
      %94 = dma.done [#allocation3], 256
    $region45: #{tpu_custom_call.1} parent=1 // pred_fallthru
      _
    // Predicated region
    $region46: #{tpu_custom_call.1} parent=1 // pred_check
      _
    $region47: #{tpu_custom_call.1} parent=1 // pred_check_branch
      %96 = sbr.rel (0) target = $region49
    $region48: #{tpu_custom_call.1} parent=1 // pred_region
      %97 = dma.done [#allocation6], 2048
    $region49: #{tpu_custom_call.1} parent=1 // pred_fallthru
      _
    // Predicated region
    $region50: #{tpu_custom_call.1} parent=1 // pred_check
      _
    $region51: #{tpu_custom_call.1} parent=1 // pred_check_branch
      %99 = sbr.rel (0) target = $region53
    $region52: #{tpu_custom_call.1} parent=1 // pred_region
      %100 = dma.done [#allocation6], 12288
    $region53: #{tpu_custom_call.1} parent=1 // pred_fallthru
      _
    // Predicated region
    $region54: #{tpu_custom_call.1} parent=1 // pred_check
      _
    $region55: #{tpu_custom_call.1} parent=1 // pred_check_branch
      %102 = sbr.rel (0) target = $region57
    $region56: #{tpu_custom_call.1} parent=1 // pred_region
      %103 = dma.done [#allocation9], 12288
    $region57: #{tpu_custom_call.1} parent=1 // pred_fallthru
      _
    // Predicated region
    $region58: #{tpu_custom_call.1} parent=1 // pred_check
      _
    $region59: #{tpu_custom_call.1} parent=1 // pred_check_branch
      %105 = sbr.rel (0) target = $region61
    $region60: #{tpu_custom_call.1} parent=1 // pred_region
      %106 = dma.done [#allocation9], 2048
    $region61: #{tpu_custom_call.1} parent=1 // pred_fallthru
      _
    %v107 = vld [vmem:[%s0] sm:$0xff]
    %v108 = vld [vmem:[#allocation5] sm:$0xff]
    %v109 = vld [vmem:[#allocation5 + $0x8] sm:$0xff]
    %v110 = vld [vmem:[#allocation5 + $0x10] sm:$0xff]
    %v111 = vld [vmem:[#allocation5 + $0x18] sm:$0xff]
    %v112 = vld [vmem:[#allocation5 + $0x20] sm:$0xff]
    %v113 = vld [vmem:[#allocation5 + $0x28] sm:$0xff]
    %v114 = vld [vmem:[#allocation5 + $0x30] sm:$0xff]
    %v115 = vld [vmem:[#allocation5 + $0x38] sm:$0xff]
    %v116 = vld [vmem:[#allocation5 + $0x40] sm:$0xff]
    %v117 = vld [vmem:[#allocation5 + $0x48] sm:$0xff]
    %v118 = vld [vmem:[#allocation5 + $0x50] sm:$0xff]
    %v119 = vld [vmem:[#allocation5 + $0x58] sm:$0xff]
    %v120 = vld [vmem:[#allocation5 + $0x60] sm:$0xff]
    %v121 = vld [vmem:[#allocation5 + $0x68] sm:$0xff]
    %v122 = vld [vmem:[#allocation5 + $0x70] sm:$0xff]
    %v123 = vld [vmem:[#allocation5 + $0x78] sm:$0xff]
    %v124 = vld [vmem:[%s3] sm:$0x1]
    %v126 = vlaneseq
    %v127 = vshrl.u32 %v126, 7
    %v128 = vsub.s32 0, %v127
    %v129 = vrot.slane %v124, %v128
    %131 = vmatprep.subr.mxu0 0.0
    %132 = vmatpush1.msra.mxu0 %v108
    %133 = vmatprep.subr.mxu0 0.0
    %134 = vmatpush1.msra.mxu0 %v109
    %135 = vmatprep.subr.mxu0 0.0
    %136 = vmatpush1.msra.mxu0 %v110
    %137 = vmatprep.subr.mxu0 0.0
    %138 = vmatpush1.msra.mxu0 %v111
    %139 = vmatprep.subr.mxu0 0.0
    %140 = vmatpush1.msra.mxu0 %v112
    %141 = vmatprep.subr.mxu0 0.0
    %142 = vmatpush1.msra.mxu0 %v113
    %143 = vmatprep.subr.mxu0 0.0
    %144 = vmatpush1.msra.mxu0 %v114
    %145 = vmatprep.subr.mxu0 0.0
    %146 = vmatpush1.msra.mxu0 %v115
    %147 = vmatprep.subr.mxu0 0.0
    %148 = vmatpush1.msra.mxu0 %v116
    %149 = vmatprep.subr.mxu0 0.0
    %150 = vmatpush1.msra.mxu0 %v117
    %151 = vmatprep.subr.mxu0 0.0
    %152 = vmatpush1.msra.mxu0 %v118
    %153 = vmatprep.subr.mxu0 0.0
    %154 = vmatpush1.msra.mxu0 %v119
    %155 = vmatprep.subr.mxu0 0.0
    %156 = vmatpush1.msra.mxu0 %v120
    %157 = vmatprep.subr.mxu0 0.0
    %158 = vmatpush1.msra.mxu0 %v121
    %159 = vmatprep.subr.mxu0 0.0
    %160 = vmatpush1.msra.mxu0 %v122
    %161 = vmatprep.subr.mxu0 0.0
    %162 = vmatpush1.msra.mxu0 %v123
    %163 = vmatprep.subr.mxu0 0.0
    %164 = vmatpush1.msra.mxu0 0.0
    %165 = vmatprep.subr.mxu0 0.0
    %166 = vmatpush1.msra.mxu0 0.0
    %167 = vmatprep.subr.mxu0 0.0
    %168 = vmatpush1.msra.mxu0 0.0
    %169 = vmatprep.subr.mxu0 0.0
    %170 = vmatpush1.msra.mxu0 0.0
    %171 = vmatprep.subr.mxu0 0.0
    %172 = vmatpush1.msra.mxu0 0.0
    %173 = vmatprep.subr.mxu0 0.0
    %174 = vmatpush1.msra.mxu0 0.0
    %175 = vmatprep.subr.mxu0 0.0
    %176 = vmatpush1.msra.mxu0 0.0
    %177 = vmatprep.subr.mxu0 0.0
    %178 = vmatpush1.msra.mxu0 0.0
    %179 = vmatprep.subr.mxu0 0.0
    %180 = vmatpush1.msra.mxu0 0.0
    %181 = vmatprep.subr.mxu0 0.0
    %182 = vmatpush1.msra.mxu0 0.0
    %183 = vmatprep.subr.mxu0 0.0
    %184 = vmatpush1.msra.mxu0 0.0
    %185 = vmatprep.subr.mxu0 0.0
    %186 = vmatpush1.msra.mxu0 0.0
    %187 = vmatprep.subr.mxu0 0.0
    %188 = vmatpush1.msra.mxu0 0.0
    %189 = vmatprep.subr.mxu0 0.0
    %190 = vmatpush1.msra.mxu0 0.0
    %191 = vmatprep.subr.mxu0 0.0
    %192 = vmatpush1.msra.mxu0 0.0
    %193 = vmatprep.subr.mxu0 0.0
    %194 = vmatpush1.msra.mxu0 0.0
    %195 = vmatprep.mubr.f32.mxu0 0.0
    %196 = vmatmul.mubr.f32.gmra.mrb[0].mxu0 %v107
    %v197 = vpop.f32.mrb[0].mxu0
    %v198 = vadd.f32 %v129, %v197
    %v199 = vpop.f32.mrb[0].mxu0
    %200 = vdwg.mxu0
    %v201 = vld [vmem:[#allocation2] sm:$0xff]
    %v202 = vld [vmem:[#allocation7] sm:$0xff]
    %v203 = vld [vmem:[#allocation7 + $0x8] sm:$0xff]
    %v204 = vld [vmem:[#allocation7 + $0x10] sm:$0xff]
    %v205 = vld [vmem:[#allocation7 + $0x18] sm:$0xff]
    %v206 = vld [vmem:[#allocation7 + $0x20] sm:$0xff]
    %v207 = vld [vmem:[#allocation7 + $0x28] sm:$0xff]
    %v208 = vld [vmem:[#allocation7 + $0x30] sm:$0xff]
    %v209 = vld [vmem:[#allocation7 + $0x38] sm:$0xff]
    %v210 = vld [vmem:[#allocation7 + $0x40] sm:$0xff]
    %v211 = vld [vmem:[#allocation7 + $0x48] sm:$0xff]
    %v212 = vld [vmem:[#allocation7 + $0x50] sm:$0xff]
    %v213 = vld [vmem:[#allocation7 + $0x58] sm:$0xff]
    %v214 = vld [vmem:[#allocation7 + $0x60] sm:$0xff]
    %v215 = vld [vmem:[#allocation7 + $0x68] sm:$0xff]
    %v216 = vld [vmem:[#allocation7 + $0x70] sm:$0xff]
    %v217 = vld [vmem:[#allocation7 + $0x78] sm:$0xff]
    %v218 = vld [vmem:[#allocation7 + $0x80] sm:$0xff]
    %v219 = vld [vmem:[#allocation7 + $0x88] sm:$0xff]
    %v220 = vld [vmem:[#allocation7 + $0x90] sm:$0xff]
    %v221 = vld [vmem:[#allocation7 + $0x98] sm:$0xff]
    %v222 = vld [vmem:[#allocation7 + $0xa0] sm:$0xff]
    %v223 = vld [vmem:[#allocation7 + $0xa8] sm:$0xff]
    %v224 = vld [vmem:[#allocation7 + $0xb0] sm:$0xff]
    %v225 = vld [vmem:[#allocation7 + $0xb8] sm:$0xff]
    %v226 = vld [vmem:[#allocation7 + $0xc0] sm:$0xff]
    %v227 = vld [vmem:[#allocation7 + $0xc8] sm:$0xff]
    %v228 = vld [vmem:[#allocation7 + $0xd0] sm:$0xff]
    %v229 = vld [vmem:[#allocation7 + $0xd8] sm:$0xff]
    %v230 = vld [vmem:[#allocation7 + $0xe0] sm:$0xff]
    %v231 = vld [vmem:[#allocation7 + $0xe8] sm:$0xff]
    %v232 = vld [vmem:[#allocation7 + $0xf0] sm:$0xff]
    %v233 = vld [vmem:[#allocation7 + $0xf8] sm:$0xff]
    %v234 = vld [vmem:[#allocation7 + $0x100] sm:$0xff]
    %v235 = vld [vmem:[#allocation7 + $0x108] sm:$0xff]
    %v236 = vld [vmem:[#allocation7 + $0x110] sm:$0xff]
    %v237 = vld [vmem:[#allocation7 + $0x118] sm:$0xff]
    %v238 = vld [vmem:[#allocation7 + $0x120] sm:$0xff]
    %v239 = vld [vmem:[#allocation7 + $0x128] sm:$0xff]
    %v240 = vld [vmem:[#allocation7 + $0x130] sm:$0xff]
    %v241 = vld [vmem:[#allocation7 + $0x138] sm:$0xff]
    %v242 = vld [vmem:[#allocation7 + $0x140] sm:$0xff]
    %v243 = vld [vmem:[#allocation7 + $0x148] sm:$0xff]
    %v244 = vld [vmem:[#allocation7 + $0x150] sm:$0xff]
    %v245 = vld [vmem:[#allocation7 + $0x158] sm:$0xff]
    %v246 = vld [vmem:[#allocation7 + $0x160] sm:$0xff]
    %v247 = vld [vmem:[#allocation7 + $0x168] sm:$0xff]
    %v248 = vld [vmem:[#allocation7 + $0x170] sm:$0xff]
    %v249 = vld [vmem:[#allocation7 + $0x178] sm:$0xff]
    %v250 = vld [vmem:[#allocation8] sm:$0xff]
    %v251 = vld [vmem:[#allocation8 + $0x8] sm:$0xff]
    %v252 = vld [vmem:[#allocation8 + $0x10] sm:$0xff]
    %v253 = vld [vmem:[#allocation8 + $0x18] sm:$0xff]
    %v254 = vld [vmem:[#allocation8 + $0x20] sm:$0xff]
    %v255 = vld [vmem:[#allocation8 + $0x28] sm:$0xff]
    %v256 = vld [vmem:[#allocation8 + $0x30] sm:$0xff]
    %v257 = vld [vmem:[#allocation8 + $0x38] sm:$0xff]
    %v258 = vld [vmem:[#allocation8 + $0x40] sm:$0xff]
    %v259 = vld [vmem:[#allocation8 + $0x48] sm:$0xff]
    %v260 = vld [vmem:[#allocation8 + $0x50] sm:$0xff]
    %v261 = vld [vmem:[#allocation8 + $0x58] sm:$0xff]
    %v262 = vld [vmem:[#allocation8 + $0x60] sm:$0xff]
    %v263 = vld [vmem:[#allocation8 + $0x68] sm:$0xff]
    %v264 = vld [vmem:[#allocation8 + $0x70] sm:$0xff]
    %v265 = vld [vmem:[#allocation8 + $0x78] sm:$0xff]
    %v266 = vld [vmem:[#allocation8 + $0x80] sm:$0xff]
    %v267 = vld [vmem:[#allocation8 + $0x88] sm:$0xff]
    %v268 = vld [vmem:[#allocation8 + $0x90] sm:$0xff]
    %v269 = vld [vmem:[#allocation8 + $0x98] sm:$0xff]
    %v270 = vld [vmem:[#allocation8 + $0xa0] sm:$0xff]
    %v271 = vld [vmem:[#allocation8 + $0xa8] sm:$0xff]
    %v272 = vld [vmem:[#allocation8 + $0xb0] sm:$0xff]
    %v273 = vld [vmem:[#allocation8 + $0xb8] sm:$0xff]
    %v274 = vld [vmem:[#allocation8 + $0xc0] sm:$0xff]
    %v275 = vld [vmem:[#allocation8 + $0xc8] sm:$0xff]
    %v276 = vld [vmem:[#allocation8 + $0xd0] sm:$0xff]
    %v277 = vld [vmem:[#allocation8 + $0xd8] sm:$0xff]
    %v278 = vld [vmem:[#allocation8 + $0xe0] sm:$0xff]
    %v279 = vld [vmem:[#allocation8 + $0xe8] sm:$0xff]
    %v280 = vld [vmem:[#allocation8 + $0xf0] sm:$0xff]
    %v281 = vld [vmem:[#allocation8 + $0xf8] sm:$0xff]
    %v282 = vld [vmem:[#allocation8 + $0x100] sm:$0xff]
    %v283 = vld [vmem:[#allocation8 + $0x108] sm:$0xff]
    %v284 = vld [vmem:[#allocation8 + $0x110] sm:$0xff]
    %v285 = vld [vmem:[#allocation8 + $0x118] sm:$0xff]
    %v286 = vld [vmem:[#allocation8 + $0x120] sm:$0xff]
    %v287 = vld [vmem:[#allocation8 + $0x128] sm:$0xff]
    %v288 = vld [vmem:[#allocation8 + $0x130] sm:$0xff]
    %v289 = vld [vmem:[#allocation8 + $0x138] sm:$0xff]
    %v290 = vld [vmem:[#allocation8 + $0x140] sm:$0xff]
    %v291 = vld [vmem:[#allocation8 + $0x148] sm:$0xff]
    %v292 = vld [vmem:[#allocation8 + $0x150] sm:$0xff]
    %v293 = vld [vmem:[#allocation8 + $0x158] sm:$0xff]
    %v294 = vld [vmem:[#allocation8 + $0x160] sm:$0xff]
    %v295 = vld [vmem:[#allocation8 + $0x168] sm:$0xff]
    %v296 = vld [vmem:[#allocation8 + $0x170] sm:$0xff]
    %v297 = vld [vmem:[#allocation8 + $0x178] sm:$0xff]
    %v298 = vld [vmem:[%s6] sm:$0x7]
    %v299 = vld [vmem:[%s7] sm:$0x1]
    %v301 = vlaneseq
    %v302 = vshrl.u32 %v301, 7
    %v303 = vsub.s32 0, %v302
    %v304 = vrot.slane %v298, %v303
    %v305 = vlaneseq
    %v306 = vshrl.u32 %v305, 7
    %v307 = vsub.s32 1, %v306
    %v308 = vrot.slane %v298, %v307
    %v309 = vlaneseq
    %v310 = vshrl.u32 %v309, 7
    %v311 = vsub.s32 2, %v310
    %v312 = vrot.slane %v298, %v311
    %316 = vmatprep.subr.mxu0 %v203
    %317 = vmatpush1.msra.mxu0 %v202
    %318 = vmatprep.subr.mxu0 %v206
    %319 = vmatpush1.msra.mxu0 %v205
    %320 = vmatprep.subr.mxu0 %v209
    %321 = vmatpush1.msra.mxu0 %v208
    %322 = vmatprep.subr.mxu0 %v212
    %323 = vmatpush1.msra.mxu0 %v211
    %324 = vmatprep.subr.mxu0 %v215
    %325 = vmatpush1.msra.mxu0 %v214
    %326 = vmatprep.subr.mxu0 %v218
    %327 = vmatpush1.msra.mxu0 %v217
    %328 = vmatprep.subr.mxu0 %v221
    %329 = vmatpush1.msra.mxu0 %v220
    %330 = vmatprep.subr.mxu0 %v224
    %331 = vmatpush1.msra.mxu0 %v223
    %332 = vmatprep.subr.mxu0 %v227
    %333 = vmatpush1.msra.mxu0 %v226
    %334 = vmatprep.subr.mxu0 %v230
    %335 = vmatpush1.msra.mxu0 %v229
    %336 = vmatprep.subr.mxu0 %v233
    %337 = vmatpush1.msra.mxu0 %v232
    %338 = vmatprep.subr.mxu0 %v236
    %339 = vmatpush1.msra.mxu0 %v235
    %340 = vmatprep.subr.mxu0 %v239
    %341 = vmatpush1.msra.mxu0 %v238
    %342 = vmatprep.subr.mxu0 %v242
    %343 = vmatpush1.msra.mxu0 %v241
    %344 = vmatprep.subr.mxu0 %v245
    %345 = vmatpush1.msra.mxu0 %v244
    %346 = vmatprep.subr.mxu0 %v248
    %347 = vmatpush1.msra.mxu0 %v247
    %348 = vmatprep.subr.mxu0 0.0
    %349 = vmatpush1.msra.mxu0 0.0
    %350 = vmatprep.subr.mxu0 0.0
    %351 = vmatpush1.msra.mxu0 0.0
    %352 = vmatprep.subr.mxu0 0.0
    %353 = vmatpush1.msra.mxu0 0.0
    %354 = vmatprep.subr.mxu0 0.0
    %355 = vmatpush1.msra.mxu0 0.0
    %356 = vmatprep.subr.mxu0 0.0
    %357 = vmatpush1.msra.mxu0 0.0
    %358 = vmatprep.subr.mxu0 0.0
    %359 = vmatpush1.msra.mxu0 0.0
    %360 = vmatprep.subr.mxu0 0.0
    %361 = vmatpush1.msra.mxu0 0.0
    %362 = vmatprep.subr.mxu0 0.0
    %363 = vmatpush1.msra.mxu0 0.0
    %364 = vmatprep.subr.mxu0 0.0
    %365 = vmatpush1.msra.mxu0 0.0
    %366 = vmatprep.subr.mxu0 0.0
    %367 = vmatpush1.msra.mxu0 0.0
    %368 = vmatprep.subr.mxu0 0.0
    %369 = vmatpush1.msra.mxu0 0.0
    %370 = vmatprep.subr.mxu0 0.0
    %371 = vmatpush1.msra.mxu0 0.0
    %372 = vmatprep.subr.mxu0 0.0
    %373 = vmatpush1.msra.mxu0 0.0
    %374 = vmatprep.subr.mxu0 0.0
    %375 = vmatpush1.msra.mxu0 0.0
    %376 = vmatprep.subr.mxu0 0.0
    %377 = vmatpush1.msra.mxu0 0.0
    %378 = vmatprep.subr.mxu0 0.0
    %379 = vmatpush1.msra.mxu0 0.0
    %380 = vmatprep.mubr.f32.mxu0 0.0
    %381 = vmatmul.mubr.f32.gmra.mrb[0].mxu0 %v198
    %v382 = vpop.f32.mrb[0].mxu0
    %v383 = vadd.f32 %v304, %v382
    %v384 = vpop.f32.mrb[0].mxu0
    %v385 = vadd.f32 %v308, %v384
    %386 = vdwg.mxu0
    %387 = vmatprep.subr.mxu0 0.0
    %388 = vmatpush1.msra.mxu0 %v204
    %389 = vmatprep.subr.mxu0 0.0
    %390 = vmatpush1.msra.mxu0 %v207
    %391 = vmatprep.subr.mxu0 0.0
    %392 = vmatpush1.msra.mxu0 %v210
    %393 = vmatprep.subr.mxu0 0.0
    %394 = vmatpush1.msra.mxu0 %v213
    %395 = vmatprep.subr.mxu0 0.0
    %396 = vmatpush1.msra.mxu0 %v216
    %397 = vmatprep.subr.mxu0 0.0
    %398 = vmatpush1.msra.mxu0 %v219
    %399 = vmatprep.subr.mxu0 0.0
    %400 = vmatpush1.msra.mxu0 %v222
    %401 = vmatprep.subr.mxu0 0.0
    %402 = vmatpush1.msra.mxu0 %v225
    %403 = vmatprep.subr.mxu0 0.0
    %404 = vmatpush1.msra.mxu0 %v228
    %405 = vmatprep.subr.mxu0 0.0
    %406 = vmatpush1.msra.mxu0 %v231
    %407 = vmatprep.subr.mxu0 0.0
    %408 = vmatpush1.msra.mxu0 %v234
    %409 = vmatprep.subr.mxu0 0.0
    %410 = vmatpush1.msra.mxu0 %v237
    %411 = vmatprep.subr.mxu0 0.0
    %412 = vmatpush1.msra.mxu0 %v240
    %413 = vmatprep.subr.mxu0 0.0
    %414 = vmatpush1.msra.mxu0 %v243
    %415 = vmatprep.subr.mxu0 0.0
    %416 = vmatpush1.msra.mxu0 %v246
    %417 = vmatprep.subr.mxu0 0.0
    %418 = vmatpush1.msra.mxu0 %v249
    %419 = vmatprep.subr.mxu0 0.0
    %420 = vmatpush1.msra.mxu0 0.0
    %421 = vmatprep.subr.mxu0 0.0
    %422 = vmatpush1.msra.mxu0 0.0
    %423 = vmatprep.subr.mxu0 0.0
    %424 = vmatpush1.msra.mxu0 0.0
    %425 = vmatprep.subr.mxu0 0.0
    %426 = vmatpush1.msra.mxu0 0.0
    %427 = vmatprep.subr.mxu0 0.0
    %428 = vmatpush1.msra.mxu0 0.0
    %429 = vmatprep.subr.mxu0 0.0
    %430 = vmatpush1.msra.mxu0 0.0
    %431 = vmatprep.subr.mxu0 0.0
    %432 = vmatpush1.msra.mxu0 0.0
    %433 = vmatprep.subr.mxu0 0.0
    %434 = vmatpush1.msra.mxu0 0.0
    %435 = vmatprep.subr.mxu0 0.0
    %436 = vmatpush1.msra.mxu0 0.0
    %437 = vmatprep.subr.mxu0 0.0
    %438 = vmatpush1.msra.mxu0 0.0
    %439 = vmatprep.subr.mxu0 0.0
    %440 = vmatpush1.msra.mxu0 0.0
    %441 = vmatprep.subr.mxu0 0.0
    %442 = vmatpush1.msra.mxu0 0.0
    %443 = vmatprep.subr.mxu0 0.0
    %444 = vmatpush1.msra.mxu0 0.0
    %445 = vmatprep.subr.mxu0 0.0
    %446 = vmatpush1.msra.mxu0 0.0
    %447 = vmatprep.subr.mxu0 0.0
    %448 = vmatpush1.msra.mxu0 0.0
    %449 = vmatprep.subr.mxu0 0.0
    %450 = vmatpush1.msra.mxu0 0.0
    %451 = vmatprep.mubr.f32.mxu0 0.0
    %452 = vmatmul.mubr.f32.gmra.mrb[0].mxu0 %v198
    %v453 = vpop.f32.mrb[0].mxu0
    %v454 = vadd.f32 %v312, %v453
    %v455 = vpop.f32.mrb[0].mxu0
    %456 = vdwg.mxu0
    %457 = vmatprep.subr.mxu0 %v251
    %458 = vmatpush1.msra.mxu0 %v250
    %459 = vmatprep.subr.mxu0 %v254
    %460 = vmatpush1.msra.mxu0 %v253
    %461 = vmatprep.subr.mxu0 %v257
    %462 = vmatpush1.msra.mxu0 %v256
    %463 = vmatprep.subr.mxu0 %v260
    %464 = vmatpush1.msra.mxu0 %v259
    %465 = vmatprep.subr.mxu0 %v263
    %466 = vmatpush1.msra.mxu0 %v262
    %467 = vmatprep.subr.mxu0 %v266
    %468 = vmatpush1.msra.mxu0 %v265
    %469 = vmatprep.subr.mxu0 %v269
    %470 = vmatpush1.msra.mxu0 %v268
    %471 = vmatprep.subr.mxu0 %v272
    %472 = vmatpush1.msra.mxu0 %v271
    %473 = vmatprep.subr.mxu0 %v275
    %474 = vmatpush1.msra.mxu0 %v274
    %475 = vmatprep.subr.mxu0 %v278
    %476 = vmatpush1.msra.mxu0 %v277
    %477 = vmatprep.subr.mxu0 %v281
    %478 = vmatpush1.msra.mxu0 %v280
    %479 = vmatprep.subr.mxu0 %v284
    %480 = vmatpush1.msra.mxu0 %v283
    %481 = vmatprep.subr.mxu0 %v287
    %482 = vmatpush1.msra.mxu0 %v286
    %483 = vmatprep.subr.mxu0 %v290
    %484 = vmatpush1.msra.mxu0 %v289
    %485 = vmatprep.subr.mxu0 %v293
    %486 = vmatpush1.msra.mxu0 %v292
    %487 = vmatprep.subr.mxu0 %v296
    %488 = vmatpush1.msra.mxu0 %v295
    %489 = vmatprep.subr.mxu0 0.0
    %490 = vmatpush1.msra.mxu0 0.0
    %491 = vmatprep.subr.mxu0 0.0
    %492 = vmatpush1.msra.mxu0 0.0
    %493 = vmatprep.subr.mxu0 0.0
    %494 = vmatpush1.msra.mxu0 0.0
    %495 = vmatprep.subr.mxu0 0.0
    %496 = vmatpush1.msra.mxu0 0.0
    %497 = vmatprep.subr.mxu0 0.0
    %498 = vmatpush1.msra.mxu0 0.0
    %499 = vmatprep.subr.mxu0 0.0
    %500 = vmatpush1.msra.mxu0 0.0
    %501 = vmatprep.subr.mxu0 0.0
    %502 = vmatpush1.msra.mxu0 0.0
    %503 = vmatprep.subr.mxu0 0.0
    %504 = vmatpush1.msra.mxu0 0.0
    %505 = vmatprep.subr.mxu0 0.0
    %506 = vmatpush1.msra.mxu0 0.0
    %507 = vmatprep.subr.mxu0 0.0
    %508 = vmatpush1.msra.mxu0 0.0
    %509 = vmatprep.subr.mxu0 0.0
    %510 = vmatpush1.msra.mxu0 0.0
    %511 = vmatprep.subr.mxu0 0.0
    %512 = vmatpush1.msra.mxu0 0.0
    %513 = vmatprep.subr.mxu0 0.0
    %514 = vmatpush1.msra.mxu0 0.0
    %515 = vmatprep.subr.mxu0 0.0
    %516 = vmatpush1.msra.mxu0 0.0
    %517 = vmatprep.subr.mxu0 0.0
    %518 = vmatpush1.msra.mxu0 0.0
    %519 = vmatprep.subr.mxu0 0.0
    %520 = vmatpush1.msra.mxu0 0.0
    %521 = vmatprep.mubr.f32.mxu0 0.0
    %522 = vmatmul.mubr.f32.gmra.mrb[0].mxu0 %v201
    %v523 = vpop.f32.mrb[0].mxu0
    %v524 = vadd.f32 0.0, %v523
    %v525 = vpop.f32.mrb[0].mxu0
    %v526 = vadd.f32 0.0, %v525
    %527 = vdwg.mxu0
    %528 = vmatprep.subr.mxu0 0.0
    %529 = vmatpush1.msra.mxu0 %v252
    %530 = vmatprep.subr.mxu0 0.0
    %531 = vmatpush1.msra.mxu0 %v255
    %532 = vmatprep.subr.mxu0 0.0
    %533 = vmatpush1.msra.mxu0 %v258
    %534 = vmatprep.subr.mxu0 0.0
    %535 = vmatpush1.msra.mxu0 %v261
    %536 = vmatprep.subr.mxu0 0.0
    %537 = vmatpush1.msra.mxu0 %v264
    %538 = vmatprep.subr.mxu0 0.0
    %539 = vmatpush1.msra.mxu0 %v267
    %540 = vmatprep.subr.mxu0 0.0
    %541 = vmatpush1.msra.mxu0 %v270
    %542 = vmatprep.subr.mxu0 0.0
    %543 = vmatpush1.msra.mxu0 %v273
    %544 = vmatprep.subr.mxu0 0.0
    %545 = vmatpush1.msra.mxu0 %v276
    %546 = vmatprep.subr.mxu0 0.0
    %547 = vmatpush1.msra.mxu0 %v279
    %548 = vmatprep.subr.mxu0 0.0
    %549 = vmatpush1.msra.mxu0 %v282
    %550 = vmatprep.subr.mxu0 0.0
    %551 = vmatpush1.msra.mxu0 %v285
    %552 = vmatprep.subr.mxu0 0.0
    %553 = vmatpush1.msra.mxu0 %v288
    %554 = vmatprep.subr.mxu0 0.0
    %555 = vmatpush1.msra.mxu0 %v291
    %556 = vmatprep.subr.mxu0 0.0
    %557 = vmatpush1.msra.mxu0 %v294
    %558 = vmatprep.subr.mxu0 0.0
    %559 = vmatpush1.msra.mxu0 %v297
    %560 = vmatprep.subr.mxu0 0.0
    %561 = vmatpush1.msra.mxu0 0.0
    %562 = vmatprep.subr.mxu0 0.0
    %563 = vmatpush1.msra.mxu0 0.0
    %564 = vmatprep.subr.mxu0 0.0
    %565 = vmatpush1.msra.mxu0 0.0
    %566 = vmatprep.subr.mxu0 0.0
    %567 = vmatpush1.msra.mxu0 0.0
    %568 = vmatprep.subr.mxu0 0.0
    %569 = vmatpush1.msra.mxu0 0.0
    %570 = vmatprep.subr.mxu0 0.0
    %571 = vmatpush1.msra.mxu0 0.0
    %572 = vmatprep.subr.mxu0 0.0
    %573 = vmatpush1.msra.mxu0 0.0
    %574 = vmatprep.subr.mxu0 0.0
    %575 = vmatpush1.msra.mxu0 0.0
    %576 = vmatprep.subr.mxu0 0.0
    %577 = vmatpush1.msra.mxu0 0.0
    %578 = vmatprep.subr.mxu0 0.0
    %579 = vmatpush1.msra.mxu0 0.0
    %580 = vmatprep.subr.mxu0 0.0
    %581 = vmatpush1.msra.mxu0 0.0
    %582 = vmatprep.subr.mxu0 0.0
    %583 = vmatpush1.msra.mxu0 0.0
    %584 = vmatprep.subr.mxu0 0.0
    %585 = vmatpush1.msra.mxu0 0.0
    %586 = vmatprep.subr.mxu0 0.0
    %587 = vmatpush1.msra.mxu0 0.0
    %588 = vmatprep.subr.mxu0 0.0
    %589 = vmatpush1.msra.mxu0 0.0
    %590 = vmatprep.subr.mxu0 0.0
    %591 = vmatpush1.msra.mxu0 0.0
    %592 = vmatprep.mubr.f32.mxu0 0.0
    %593 = vmatmul.mubr.f32.gmra.mrb[0].mxu0 %v201
    %v594 = vpop.f32.mrb[0].mxu0
    %v595 = vadd.f32 0.0, %v594
    %v596 = vpop.f32.mrb[0].mxu0
    %597 = vdwg.mxu0
    %v598 = vadd.f32 %v383, %v524
    %v599 = vxor.u32 %v598, 2147483648
    %v600 = vmul.f32 %v599, 1.442695
    %v601 = vpow.pop %v600
    %v602 = vadd.f32 %v601, 1.0
    %v603 = vrcp.pop %v602
    %v604 = vmul.f32 1.0, %v603
    %v605 = vadd.f32 %v385, %v526
    %v606 = vxor.u32 %v605, 2147483648
    %v607 = vmul.f32 %v606, 1.442695
    %v608 = vpow.pop %v607
    %v609 = vadd.f32 %v608, 1.0
    %v610 = vrcp.pop %v609
    %v611 = vmul.f32 1.0, %v610
    %v613 = vlaneseq
    %v614 = vshrl.u32 %v613, 7
    %v615 = vsub.s32 0, %v614
    %v616 = vrot.slane %v299, %v615
    %v618 = vadd.f32 %v595, %v616
    %v619 = vmul.f32 %v604, %v618
    %v620 = vadd.f32 %v454, %v619
    %v621 = vtanh.pop %v620
    %v622 = vsub.f32 1.0, %v611
    %v623 = vmul.f32 %v622, %v621
    %v624 = vmul.f32 %v611, %v201
    %v625 = vadd.f32 %v623, %v624
    %626 = vst [vmem:[#allocation12] sm:$0xff] %v625
    %v627 = vadd.f32 %v625, 0.0
    %s628 = scalar_lea.vmem [#allocation2], 8
    %v629 = vld [vmem:[%s628] sm:$0xff]
    %s630 = scalar_lea.vmem [#allocation7], 384
    %v631 = vld [vmem:[%s630] sm:$0xff]
    %v632 = vld [vmem:[%s630 + $0x8] sm:$0xff]
    %v633 = vld [vmem:[%s630 + $0x10] sm:$0xff]
    %v634 = vld [vmem:[%s630 + $0x18] sm:$0xff]
    %v635 = vld [vmem:[%s630 + $0x20] sm:$0xff]
    %v636 = vld [vmem:[%s630 + $0x28] sm:$0xff]
    %v637 = vld [vmem:[%s630 + $0x30] sm:$0xff]
    %v638 = vld [vmem:[%s630 + $0x38] sm:$0xff]
    %v639 = vld [vmem:[%s630 + $0x40] sm:$0xff]
    %v640 = vld [vmem:[%s630 + $0x48] sm:$0xff]
    %v641 = vld [vmem:[%s630 + $0x50] sm:$0xff]
    %v642 = vld [vmem:[%s630 + $0x58] sm:$0xff]
    %v643 = vld [vmem:[%s630 + $0x60] sm:$0xff]
    %v644 = vld [vmem:[%s630 + $0x68] sm:$0xff]
    %v645 = vld [vmem:[%s630 + $0x70] sm:$0xff]
    %v646 = vld [vmem:[%s630 + $0x78] sm:$0xff]
    %v647 = vld [vmem:[%s630 + $0x80] sm:$0xff]
    %v648 = vld [vmem:[%s630 + $0x88] sm:$0xff]
    %v649 = vld [vmem:[%s630 + $0x90] sm:$0xff]
    %v650 = vld [vmem:[%s630 + $0x98] sm:$0xff]
    %v651 = vld [vmem:[%s630 + $0xa0] sm:$0xff]
    %v652 = vld [vmem:[%s630 + $0xa8] sm:$0xff]
    %v653 = vld [vmem:[%s630 + $0xb0] sm:$0xff]
    %v654 = vld [vmem:[%s630 + $0xb8] sm:$0xff]
    %v655 = vld [vmem:[%s630 + $0xc0] sm:$0xff]
    %v656 = vld [vmem:[%s630 + $0xc8] sm:$0xff]
    %v657 = vld [vmem:[%s630 + $0xd0] sm:$0xff]
    %v658 = vld [vmem:[%s630 + $0xd8] sm:$0xff]
    %v659 = vld [vmem:[%s630 + $0xe0] sm:$0xff]
    %v660 = vld [vmem:[%s630 + $0xe8] sm:$0xff]
    %v661 = vld [vmem:[%s630 + $0xf0] sm:$0xff]
    %v662 = vld [vmem:[%s630 + $0xf8] sm:$0xff]
    %v663 = vld [vmem:[%s630 + $0x100] sm:$0xff]
    %v664 = vld [vmem:[%s630 + $0x108] sm:$0xff]
    %v665 = vld [vmem:[%s630 + $0x110] sm:$0xff]
    %v666 = vld [vmem:[%s630 + $0x118] sm:$0xff]
    %v667 = vld [vmem:[%s630 + $0x120] sm:$0xff]
    %v668 = vld [vmem:[%s630 + $0x128] sm:$0xff]
    %v669 = vld [vmem:[%s630 + $0x130] sm:$0xff]
    %v670 = vld [vmem:[%s630 + $0x138] sm:$0xff]
    %v671 = vld [vmem:[%s630 + $0x140] sm:$0xff]
    %v672 = vld [vmem:[%s630 + $0x148] sm:$0xff]
    %v673 = vld [vmem:[%s630 + $0x150] sm:$0xff]
    %v674 = vld [vmem:[%s630 + $0x158] sm:$0xff]
    %v675 = vld [vmem:[%s630 + $0x160] sm:$0xff]
    %v676 = vld [vmem:[%s630 + $0x168] sm:$0xff]
    %v677 = vld [vmem:[%s630 + $0x170] sm:$0xff]
    %v678 = vld [vmem:[%s630 + $0x178] sm:$0xff]
    %s679 = scalar_lea.vmem [#allocation8], 384
    %v680 = vld [vmem:[%s679] sm:$0xff]
    %v681 = vld [vmem:[%s679 + $0x8] sm:$0xff]
    %v682 = vld [vmem:[%s679 + $0x10] sm:$0xff]
    %v683 = vld [vmem:[%s679 + $0x18] sm:$0xff]
    %v684 = vld [vmem:[%s679 + $0x20] sm:$0xff]
    %v685 = vld [vmem:[%s679 + $0x28] sm:$0xff]
    %v686 = vld [vmem:[%s679 + $0x30] sm:$0xff]
    %v687 = vld [vmem:[%s679 + $0x38] sm:$0xff]
    %v688 = vld [vmem:[%s679 + $0x40] sm:$0xff]
    %v689 = vld [vmem:[%s679 + $0x48] sm:$0xff]
    %v690 = vld [vmem:[%s679 + $0x50] sm:$0xff]
    %v691 = vld [vmem:[%s679 + $0x58] sm:$0xff]
    %v692 = vld [vmem:[%s679 + $0x60] sm:$0xff]
    %v693 = vld [vmem:[%s679 + $0x68] sm:$0xff]
    %v694 = vld [vmem:[%s679 + $0x70] sm:$0xff]
    %v695 = vld [vmem:[%s679 + $0x78] sm:$0xff]
    %v696 = vld [vmem:[%s679 + $0x80] sm:$0xff]
    %v697 = vld [vmem:[%s679 + $0x88] sm:$0xff]
    %v698 = vld [vmem:[%s679 + $0x90] sm:$0xff]
    %v699 = vld [vmem:[%s679 + $0x98] sm:$0xff]
    %v700 = vld [vmem:[%s679 + $0xa0] sm:$0xff]
    %v701 = vld [vmem:[%s679 + $0xa8] sm:$0xff]
    %v702 = vld [vmem:[%s679 + $0xb0] sm:$0xff]
    %v703 = vld [vmem:[%s679 + $0xb8] sm:$0xff]
    %v704 = vld [vmem:[%s679 + $0xc0] sm:$0xff]
    %v705 = vld [vmem:[%s679 + $0xc8] sm:$0xff]
    %v706 = vld [vmem:[%s679 + $0xd0] sm:$0xff]
    %v707 = vld [vmem:[%s679 + $0xd8] sm:$0xff]
    %v708 = vld [vmem:[%s679 + $0xe0] sm:$0xff]
    %v709 = vld [vmem:[%s679 + $0xe8] sm:$0xff]
    %v710 = vld [vmem:[%s679 + $0xf0] sm:$0xff]
    %v711 = vld [vmem:[%s679 + $0xf8] sm:$0xff]
    %v712 = vld [vmem:[%s679 + $0x100] sm:$0xff]
    %v713 = vld [vmem:[%s679 + $0x108] sm:$0xff]
    %v714 = vld [vmem:[%s679 + $0x110] sm:$0xff]
    %v715 = vld [vmem:[%s679 + $0x118] sm:$0xff]
    %v716 = vld [vmem:[%s679 + $0x120] sm:$0xff]
    %v717 = vld [vmem:[%s679 + $0x128] sm:$0xff]
    %v718 = vld [vmem:[%s679 + $0x130] sm:$0xff]
    %v719 = vld [vmem:[%s679 + $0x138] sm:$0xff]
    %v720 = vld [vmem:[%s679 + $0x140] sm:$0xff]
    %v721 = vld [vmem:[%s679 + $0x148] sm:$0xff]
    %v722 = vld [vmem:[%s679 + $0x150] sm:$0xff]
    %v723 = vld [vmem:[%s679 + $0x158] sm:$0xff]
    %v724 = vld [vmem:[%s679 + $0x160] sm:$0xff]
    %v725 = vld [vmem:[%s679 + $0x168] sm:$0xff]
    %v726 = vld [vmem:[%s679 + $0x170] sm:$0xff]
    %v727 = vld [vmem:[%s679 + $0x178] sm:$0xff]
    %s728 = scalar_lea.vmem %s6, 3
    %v729 = vld [vmem:[%s728] sm:$0x7]
    %s730 = scalar_lea.vmem %s7, 1
    %v731 = vld [vmem:[%s730] sm:$0x1]
    %v733 = vlaneseq
    %v734 = vshrl.u32 %v733, 7
    %v735 = vsub.s32 0, %v734
    %v736 = vrot.slane %v729, %v735
    %v737 = vlaneseq
    %v738 = vshrl.u32 %v737, 7
    %v739 = vsub.s32 1, %v738
    %v740 = vrot.slane %v729, %v739
    %v741 = vlaneseq
    %v742 = vshrl.u32 %v741, 7
    %v743 = vsub.s32 2, %v742
    %v744 = vrot.slane %v729, %v743
    %748 = vmatprep.subr.mxu0 %v632
    %749 = vmatpush1.msra.mxu0 %v631
    %750 = vmatprep.subr.mxu0 %v635
    %751 = vmatpush1.msra.mxu0 %v634
    %752 = vmatprep.subr.mxu0 %v638
    %753 = vmatpush1.msra.mxu0 %v637
    %754 = vmatprep.subr.mxu0 %v641
    %755 = vmatpush1.msra.mxu0 %v640
    %756 = vmatprep.subr.mxu0 %v644
    %757 = vmatpush1.msra.mxu0 %v643
    %758 = vmatprep.subr.mxu0 %v647
    %759 = vmatpush1.msra.mxu0 %v646
    %760 = vmatprep.subr.mxu0 %v650
    %761 = vmatpush1.msra.mxu0 %v649
    %762 = vmatprep.subr.mxu0 %v653
    %763 = vmatpush1.msra.mxu0 %v652
    %764 = vmatprep.subr.mxu0 %v656
    %765 = vmatpush1.msra.mxu0 %v655
    %766 = vmatprep.subr.mxu0 %v659
    %767 = vmatpush1.msra.mxu0 %v658
    %768 = vmatprep.subr.mxu0 %v662
    %769 = vmatpush1.msra.mxu0 %v661
    %770 = vmatprep.subr.mxu0 %v665
    %771 = vmatpush1.msra.mxu0 %v664
    %772 = vmatprep.subr.mxu0 %v668
    %773 = vmatpush1.msra.mxu0 %v667
    %774 = vmatprep.subr.mxu0 %v671
    %775 = vmatpush1.msra.mxu0 %v670
    %776 = vmatprep.subr.mxu0 %v674
    %777 = vmatpush1.msra.mxu0 %v673
    %778 = vmatprep.subr.mxu0 %v677
    %779 = vmatpush1.msra.mxu0 %v676
    %780 = vmatprep.subr.mxu0 0.0
    %781 = vmatpush1.msra.mxu0 0.0
    %782 = vmatprep.subr.mxu0 0.0
    %783 = vmatpush1.msra.mxu0 0.0
    %784 = vmatprep.subr.mxu0 0.0
    %785 = vmatpush1.msra.mxu0 0.0
    %786 = vmatprep.subr.mxu0 0.0
    %787 = vmatpush1.msra.mxu0 0.0
    %788 = vmatprep.subr.mxu0 0.0
    %789 = vmatpush1.msra.mxu0 0.0
    %790 = vmatprep.subr.mxu0 0.0
    %791 = vmatpush1.msra.mxu0 0.0
    %792 = vmatprep.subr.mxu0 0.0
    %793 = vmatpush1.msra.mxu0 0.0
    %794 = vmatprep.subr.mxu0 0.0
    %795 = vmatpush1.msra.mxu0 0.0
    %796 = vmatprep.subr.mxu0 0.0
    %797 = vmatpush1.msra.mxu0 0.0
    %798 = vmatprep.subr.mxu0 0.0
    %799 = vmatpush1.msra.mxu0 0.0
    %800 = vmatprep.subr.mxu0 0.0
    %801 = vmatpush1.msra.mxu0 0.0
    %802 = vmatprep.subr.mxu0 0.0
    %803 = vmatpush1.msra.mxu0 0.0
    %804 = vmatprep.subr.mxu0 0.0
    %805 = vmatpush1.msra.mxu0 0.0
    %806 = vmatprep.subr.mxu0 0.0
    %807 = vmatpush1.msra.mxu0 0.0
    %808 = vmatprep.subr.mxu0 0.0
    %809 = vmatpush1.msra.mxu0 0.0
    %810 = vmatprep.subr.mxu0 0.0
    %811 = vmatpush1.msra.mxu0 0.0
    %812 = vmatprep.mubr.f32.mxu0 0.0
    %813 = vmatmul.mubr.f32.gmra.mrb[0].mxu0 %v625
    %v814 = vpop.f32.mrb[0].mxu0
    %v815 = vadd.f32 %v736, %v814
    %v816 = vpop.f32.mrb[0].mxu0
    %v817 = vadd.f32 %v740, %v816
    %818 = vdwg.mxu0
    %819 = vmatprep.subr.mxu0 0.0
    %820 = vmatpush1.msra.mxu0 %v633
    %821 = vmatprep.subr.mxu0 0.0
    %822 = vmatpush1.msra.mxu0 %v636
    %823 = vmatprep.subr.mxu0 0.0
    %824 = vmatpush1.msra.mxu0 %v639
    %825 = vmatprep.subr.mxu0 0.0
    %826 = vmatpush1.msra.mxu0 %v642
    %827 = vmatprep.subr.mxu0 0.0
    %828 = vmatpush1.msra.mxu0 %v645
    %829 = vmatprep.subr.mxu0 0.0
    %830 = vmatpush1.msra.mxu0 %v648
    %831 = vmatprep.subr.mxu0 0.0
    %832 = vmatpush1.msra.mxu0 %v651
    %833 = vmatprep.subr.mxu0 0.0
    %834 = vmatpush1.msra.mxu0 %v654
    %835 = vmatprep.subr.mxu0 0.0
    %836 = vmatpush1.msra.mxu0 %v657
    %837 = vmatprep.subr.mxu0 0.0
    %838 = vmatpush1.msra.mxu0 %v660
    %839 = vmatprep.subr.mxu0 0.0
    %840 = vmatpush1.msra.mxu0 %v663
    %841 = vmatprep.subr.mxu0 0.0
    %842 = vmatpush1.msra.mxu0 %v666
    %843 = vmatprep.subr.mxu0 0.0
    %844 = vmatpush1.msra.mxu0 %v669
    %845 = vmatprep.subr.mxu0 0.0
    %846 = vmatpush1.msra.mxu0 %v672
    %847 = vmatprep.subr.mxu0 0.0
    %848 = vmatpush1.msra.mxu0 %v675
    %849 = vmatprep.subr.mxu0 0.0
    %850 = vmatpush1.msra.mxu0 %v678
    %851 = vmatprep.subr.mxu0 0.0
    %852 = vmatpush1.msra.mxu0 0.0
    %853 = vmatprep.subr.mxu0 0.0
    %854 = vmatpush1.msra.mxu0 0.0
    %855 = vmatprep.subr.mxu0 0.0
    %856 = vmatpush1.msra.mxu0 0.0
    %857 = vmatprep.subr.mxu0 0.0
    %858 = vmatpush1.msra.mxu0 0.0
    %859 = vmatprep.subr.mxu0 0.0
    %860 = vmatpush1.msra.mxu0 0.0
    %861 = vmatprep.subr.mxu0 0.0
    %862 = vmatpush1.msra.mxu0 0.0
    %863 = vmatprep.subr.mxu0 0.0
    %864 = vmatpush1.msra.mxu0 0.0
    %865 = vmatprep.subr.mxu0 0.0
    %866 = vmatpush1.msra.mxu0 0.0
    %867 = vmatprep.subr.mxu0 0.0
    %868 = vmatpush1.msra.mxu0 0.0
    %869 = vmatprep.subr.mxu0 0.0
    %870 = vmatpush1.msra.mxu0 0.0
    %871 = vmatprep.subr.mxu0 0.0
    %872 = vmatpush1.msra.mxu0 0.0
    %873 = vmatprep.subr.mxu0 0.0
    %874 = vmatpush1.msra.mxu0 0.0
    %875 = vmatprep.subr.mxu0 0.0
    %876 = vmatpush1.msra.mxu0 0.0
    %877 = vmatprep.subr.mxu0 0.0
    %878 = vmatpush1.msra.mxu0 0.0
    %879 = vmatprep.subr.mxu0 0.0
    %880 = vmatpush1.msra.mxu0 0.0
    %881 = vmatprep.subr.mxu0 0.0
    %882 = vmatpush1.msra.mxu0 0.0
    %883 = vmatprep.mubr.f32.mxu0 0.0
    %884 = vmatmul.mubr.f32.gmra.mrb[0].mxu0 %v625
    %v885 = vpop.f32.mrb[0].mxu0
    %v886 = vadd.f32 %v744, %v885
    %v887 = vpop.f32.mrb[0].mxu0
    %888 = vdwg.mxu0
    %889 = vmatprep.subr.mxu0 %v681
    %890 = vmatpush1.msra.mxu0 %v680
    %891 = vmatprep.subr.mxu0 %v684
    %892 = vmatpush1.msra.mxu0 %v683
    %893 = vmatprep.subr.mxu0 %v687
    %894 = vmatpush1.msra.mxu0 %v686
    %895 = vmatprep.subr.mxu0 %v690
    %896 = vmatpush1.msra.mxu0 %v689
    %897 = vmatprep.subr.mxu0 %v693
    %898 = vmatpush1.msra.mxu0 %v692
    %899 = vmatprep.subr.mxu0 %v696
    %900 = vmatpush1.msra.mxu0 %v695
    %901 = vmatprep.subr.mxu0 %v699
    %902 = vmatpush1.msra.mxu0 %v698
    %903 = vmatprep.subr.mxu0 %v702
    %904 = vmatpush1.msra.mxu0 %v701
    %905 = vmatprep.subr.mxu0 %v705
    %906 = vmatpush1.msra.mxu0 %v704
    %907 = vmatprep.subr.mxu0 %v708
    %908 = vmatpush1.msra.mxu0 %v707
    %909 = vmatprep.subr.mxu0 %v711
    %910 = vmatpush1.msra.mxu0 %v710
    %911 = vmatprep.subr.mxu0 %v714
    %912 = vmatpush1.msra.mxu0 %v713
    %913 = vmatprep.subr.mxu0 %v717
    %914 = vmatpush1.msra.mxu0 %v716
    %915 = vmatprep.subr.mxu0 %v720
    %916 = vmatpush1.msra.mxu0 %v719
    %917 = vmatprep.subr.mxu0 %v723
    %918 = vmatpush1.msra.mxu0 %v722
    %919 = vmatprep.subr.mxu0 %v726
    %920 = vmatpush1.msra.mxu0 %v725
    %921 = vmatprep.subr.mxu0 0.0
    %922 = vmatpush1.msra.mxu0 0.0
    %923 = vmatprep.subr.mxu0 0.0
    %924 = vmatpush1.msra.mxu0 0.0
    %925 = vmatprep.subr.mxu0 0.0
    %926 = vmatpush1.msra.mxu0 0.0
    %927 = vmatprep.subr.mxu0 0.0
    %928 = vmatpush1.msra.mxu0 0.0
    %929 = vmatprep.subr.mxu0 0.0
    %930 = vmatpush1.msra.mxu0 0.0
    %931 = vmatprep.subr.mxu0 0.0
    %932 = vmatpush1.msra.mxu0 0.0
    %933 = vmatprep.subr.mxu0 0.0
    %934 = vmatpush1.msra.mxu0 0.0
    %935 = vmatprep.subr.mxu0 0.0
    %936 = vmatpush1.msra.mxu0 0.0
    %937 = vmatprep.subr.mxu0 0.0
    %938 = vmatpush1.msra.mxu0 0.0
    %939 = vmatprep.subr.mxu0 0.0
    %940 = vmatpush1.msra.mxu0 0.0
    %941 = vmatprep.subr.mxu0 0.0
    %942 = vmatpush1.msra.mxu0 0.0
    %943 = vmatprep.subr.mxu0 0.0
    %944 = vmatpush1.msra.mxu0 0.0
    %945 = vmatprep.subr.mxu0 0.0
    %946 = vmatpush1.msra.mxu0 0.0
    %947 = vmatprep.subr.mxu0 0.0
    %948 = vmatpush1.msra.mxu0 0.0
    %949 = vmatprep.subr.mxu0 0.0
    %950 = vmatpush1.msra.mxu0 0.0
    %951 = vmatprep.subr.mxu0 0.0
    %952 = vmatpush1.msra.mxu0 0.0
    %953 = vmatprep.mubr.f32.mxu0 0.0
    %954 = vmatmul.mubr.f32.gmra.mrb[0].mxu0 %v629
    %v955 = vpop.f32.mrb[0].mxu0
    %v956 = vadd.f32 0.0, %v955
    %v957 = vpop.f32.mrb[0].mxu0
    %v958 = vadd.f32 0.0, %v957
    %959 = vdwg.mxu0
    %960 = vmatprep.subr.mxu0 0.0
    %961 = vmatpush1.msra.mxu0 %v682
    %962 = vmatprep.subr.mxu0 0.0
    %963 = vmatpush1.msra.mxu0 %v685
    %964 = vmatprep.subr.mxu0 0.0
    %965 = vmatpush1.msra.mxu0 %v688
    %966 = vmatprep.subr.mxu0 0.0
    %967 = vmatpush1.msra.mxu0 %v691
    %968 = vmatprep.subr.mxu0 0.0
    %969 = vmatpush1.msra.mxu0 %v694
    %970 = vmatprep.subr.mxu0 0.0
    %971 = vmatpush1.msra.mxu0 %v697
    %972 = vmatprep.subr.mxu0 0.0
    %973 = vmatpush1.msra.mxu0 %v700
    %974 = vmatprep.subr.mxu0 0.0
    %975 = vmatpush1.msra.mxu0 %v703
    %976 = vmatprep.subr.mxu0 0.0
    %977 = vmatpush1.msra.mxu0 %v706
    %978 = vmatprep.subr.mxu0 0.0
    %979 = vmatpush1.msra.mxu0 %v709
    %980 = vmatprep.subr.mxu0 0.0
    %981 = vmatpush1.msra.mxu0 %v712
    %982 = vmatprep.subr.mxu0 0.0
    %983 = vmatpush1.msra.mxu0 %v715
    %984 = vmatprep.subr.mxu0 0.0
    %985 = vmatpush1.msra.mxu0 %v718
    %986 = vmatprep.subr.mxu0 0.0
    %987 = vmatpush1.msra.mxu0 %v721
    %988 = vmatprep.subr.mxu0 0.0
    %989 = vmatpush1.msra.mxu0 %v724
    %990 = vmatprep.subr.mxu0 0.0
    %991 = vmatpush1.msra.mxu0 %v727
    %992 = vmatprep.subr.mxu0 0.0
    %993 = vmatpush1.msra.mxu0 0.0
    %994 = vmatprep.subr.mxu0 0.0
    %995 = vmatpush1.msra.mxu0 0.0
    %996 = vmatprep.subr.mxu0 0.0
    %997 = vmatpush1.msra.mxu0 0.0
    %998 = vmatprep.subr.mxu0 0.0
    %999 = vmatpush1.msra.mxu0 0.0
    %1000 = vmatprep.subr.mxu0 0.0
    %1001 = vmatpush1.msra.mxu0 0.0
    %1002 = vmatprep.subr.mxu0 0.0
    %1003 = vmatpush1.msra.mxu0 0.0
    %1004 = vmatprep.subr.mxu0 0.0
    %1005 = vmatpush1.msra.mxu0 0.0
    %1006 = vmatprep.subr.mxu0 0.0
    %1007 = vmatpush1.msra.mxu0 0.0
    %1008 = vmatprep.subr.mxu0 0.0
    %1009 = vmatpush1.msra.mxu0 0.0
    %1010 = vmatprep.subr.mxu0 0.0
    %1011 = vmatpush1.msra.mxu0 0.0
    %1012 = vmatprep.subr.mxu0 0.0
    %1013 = vmatpush1.msra.mxu0 0.0
    %1014 = vmatprep.subr.mxu0 0.0
    %1015 = vmatpush1.msra.mxu0 0.0
    %1016 = vmatprep.subr.mxu0 0.0
    %1017 = vmatpush1.msra.mxu0 0.0
    %1018 = vmatprep.subr.mxu0 0.0
    %1019 = vmatpush1.msra.mxu0 0.0
    %1020 = vmatprep.subr.mxu0 0.0
    %1021 = vmatpush1.msra.mxu0 0.0
    %1022 = vmatprep.subr.mxu0 0.0
    %1023 = vmatpush1.msra.mxu0 0.0
    %1024 = vmatprep.mubr.f32.mxu0 0.0
    %1025 = vmatmul.mubr.f32.gmra.mrb[0].mxu0 %v629
    %v1026 = vpop.f32.mrb[0].mxu0
    %v1027 = vadd.f32 0.0, %v1026
    %v1028 = vpop.f32.mrb[0].mxu0
    %1029 = vdwg.mxu0
    %v1030 = vadd.f32 %v815, %v956
    %v1031 = vxor.u32 %v1030, 2147483648
    %v1032 = vmul.f32 %v1031, 1.442695
    %v1033 = vpow.pop %v1032
    %v1034 = vadd.f32 %v1033, 1.0
    %v1035 = vrcp.pop %v1034
    %v1036 = vmul.f32 1.0, %v1035
    %v1037 = vadd.f32 %v817, %v958
    %v1038 = vxor.u32 %v1037, 2147483648
    %v1039 = vmul.f32 %v1038, 1.442695
    %v1040 = vpow.pop %v1039
    %v1041 = vadd.f32 %v1040, 1.0
    %v1042 = vrcp.pop %v1041
    %v1043 = vmul.f32 1.0, %v1042
    %v1045 = vlaneseq
    %v1046 = vshrl.u32 %v1045, 7
    %v1047 = vsub.s32 0, %v1046
    %v1048 = vrot.slane %v731, %v1047
    %v1050 = vadd.f32 %v1027, %v1048
    %v1051 = vmul.f32 %v1036, %v1050
    %v1052 = vadd.f32 %v886, %v1051
    %v1053 = vtanh.pop %v1052
    %v1054 = vsub.f32 1.0, %v1043
    %v1055 = vmul.f32 %v1054, %v1053
    %v1056 = vmul.f32 %v1043, %v629
    %v1057 = vadd.f32 %v1055, %v1056
    %s1058 = scalar_lea.vmem [#allocation12], 8
    %1059 = vst [vmem:[%s1058] sm:$0xff] %v1057
    %v1060 = vadd.f32 %v627, %v1057
    %v1061 = vld [vmem:[#allocation10] sm:$0xff]
    %v1062 = vld [vmem:[#allocation10 + $0x8] sm:$0xff]
    %v1063 = vld [vmem:[#allocation10 + $0x10] sm:$0xff]
    %v1064 = vld [vmem:[#allocation10 + $0x18] sm:$0xff]
    %v1065 = vld [vmem:[#allocation10 + $0x20] sm:$0xff]
    %v1066 = vld [vmem:[#allocation10 + $0x28] sm:$0xff]
    %v1067 = vld [vmem:[#allocation10 + $0x30] sm:$0xff]
    %v1068 = vld [vmem:[#allocation10 + $0x38] sm:$0xff]
    %v1069 = vld [vmem:[#allocation10 + $0x40] sm:$0xff]
    %v1070 = vld [vmem:[#allocation10 + $0x48] sm:$0xff]
    %v1071 = vld [vmem:[#allocation10 + $0x50] sm:$0xff]
    %v1072 = vld [vmem:[#allocation10 + $0x58] sm:$0xff]
    %v1073 = vld [vmem:[#allocation10 + $0x60] sm:$0xff]
    %v1074 = vld [vmem:[#allocation10 + $0x68] sm:$0xff]
    %v1075 = vld [vmem:[#allocation10 + $0x70] sm:$0xff]
    %v1076 = vld [vmem:[#allocation10 + $0x78] sm:$0xff]
    %v1077 = vld [vmem:[%s9] sm:$0x1]
    %v1079 = vlaneseq
    %v1080 = vshrl.u32 %v1079, 7
    %v1081 = vsub.s32 0, %v1080
    %v1082 = vrot.slane %v1077, %v1081
    %1084 = vmatprep.subr.mxu0 0.0
    %1085 = vmatpush1.msra.mxu0 %v1061
    %1086 = vmatprep.subr.mxu0 0.0
    %1087 = vmatpush1.msra.mxu0 %v1062
    %1088 = vmatprep.subr.mxu0 0.0
    %1089 = vmatpush1.msra.mxu0 %v1063
    %1090 = vmatprep.subr.mxu0 0.0
    %1091 = vmatpush1.msra.mxu0 %v1064
    %1092 = vmatprep.subr.mxu0 0.0
    %1093 = vmatpush1.msra.mxu0 %v1065
    %1094 = vmatprep.subr.mxu0 0.0
    %1095 = vmatpush1.msra.mxu0 %v1066
    %1096 = vmatprep.subr.mxu0 0.0
    %1097 = vmatpush1.msra.mxu0 %v1067
    %1098 = vmatprep.subr.mxu0 0.0
    %1099 = vmatpush1.msra.mxu0 %v1068
    %1100 = vmatprep.subr.mxu0 0.0
    %1101 = vmatpush1.msra.mxu0 %v1069
    %1102 = vmatprep.subr.mxu0 0.0
    %1103 = vmatpush1.msra.mxu0 %v1070
    %1104 = vmatprep.subr.mxu0 0.0
    %1105 = vmatpush1.msra.mxu0 %v1071
    %1106 = vmatprep.subr.mxu0 0.0
    %1107 = vmatpush1.msra.mxu0 %v1072
    %1108 = vmatprep.subr.mxu0 0.0
    %1109 = vmatpush1.msra.mxu0 %v1073
    %1110 = vmatprep.subr.mxu0 0.0
    %1111 = vmatpush1.msra.mxu0 %v1074
    %1112 = vmatprep.subr.mxu0 0.0
    %1113 = vmatpush1.msra.mxu0 %v1075
    %1114 = vmatprep.subr.mxu0 0.0
    %1115 = vmatpush1.msra.mxu0 %v1076
    %1116 = vmatprep.subr.mxu0 0.0
    %1117 = vmatpush1.msra.mxu0 0.0
    %1118 = vmatprep.subr.mxu0 0.0
    %1119 = vmatpush1.msra.mxu0 0.0
    %1120 = vmatprep.subr.mxu0 0.0
    %1121 = vmatpush1.msra.mxu0 0.0
    %1122 = vmatprep.subr.mxu0 0.0
    %1123 = vmatpush1.msra.mxu0 0.0
    %1124 = vmatprep.subr.mxu0 0.0
    %1125 = vmatpush1.msra.mxu0 0.0
    %1126 = vmatprep.subr.mxu0 0.0
    %1127 = vmatpush1.msra.mxu0 0.0
    %1128 = vmatprep.subr.mxu0 0.0
    %1129 = vmatpush1.msra.mxu0 0.0
    %1130 = vmatprep.subr.mxu0 0.0
    %1131 = vmatpush1.msra.mxu0 0.0
    %1132 = vmatprep.subr.mxu0 0.0
    %1133 = vmatpush1.msra.mxu0 0.0
    %1134 = vmatprep.subr.mxu0 0.0
    %1135 = vmatpush1.msra.mxu0 0.0
    %1136 = vmatprep.subr.mxu0 0.0
    %1137 = vmatpush1.msra.mxu0 0.0
    %1138 = vmatprep.subr.mxu0 0.0
    %1139 = vmatpush1.msra.mxu0 0.0
    %1140 = vmatprep.subr.mxu0 0.0
    %1141 = vmatpush1.msra.mxu0 0.0
    %1142 = vmatprep.subr.mxu0 0.0
    %1143 = vmatpush1.msra.mxu0 0.0
    %1144 = vmatprep.subr.mxu0 0.0
    %1145 = vmatpush1.msra.mxu0 0.0
    %1146 = vmatprep.subr.mxu0 0.0
    %1147 = vmatpush1.msra.mxu0 0.0
    %1148 = vmatprep.mubr.f32.mxu0 0.0
    %1149 = vmatmul.mubr.f32.gmra.mrb[0].mxu0 %v1060
    %v1150 = vpop.f32.mrb[0].mxu0
    %v1151 = vadd.f32 %v1082, %v1150
    %v1152 = vpop.f32.mrb[0].mxu0
    %1153 = vdwg.mxu0
    %1154 = vst [vmem:[#allocation11] sm:$0xff] %v1151
    // Predicated region
    $region62: #{tpu_custom_call.1} parent=1 // pred_check
      _
    $region63: #{tpu_custom_call.1} parent=1 // pred_check_branch
      %1156 = sbr.rel (0) target = $region65
    $region64: #{tpu_custom_call.1} parent=1 // pred_region
      %s1158 = ssub.s32 128, 128
      %1159 = vsyncadd [#allocation4], %s1158
      %s1161 = sshll.u32 [#allocation11], 4
      %s1162 = int_to_ptr.vmem [resolvable:$true] %s1161
      %1164 = dma.vmem_to_hbm [thread:$0]  %s1162, 128, %s10, [#allocation4]
    $region65: #{tpu_custom_call.1} parent=1 // pred_fallthru
      _
    // Predicated region
    $region66: #{tpu_custom_call.1} parent=1 // pred_check
      _
    $region67: #{tpu_custom_call.1} parent=1 // pred_check_branch
      %1166 = sbr.rel (0) target = $region69
    $region68: #{tpu_custom_call.1} parent=1 // pred_region
      %s1168 = ssub.s32 256, 256
      %1169 = vsyncadd [#allocation13], %s1168
      %s1170 = sshll.u32 [#allocation12], 4
      %s1171 = int_to_ptr.vmem [resolvable:$true] %s1170
      %1176 = dma.vmem_to_hbm [thread:$0]  %s1171, 256, %s11, [#allocation13], 128, 128, 8
    $region69: #{tpu_custom_call.1} parent=1 // pred_fallthru
      _
    // Predicated region
    $region70: #{tpu_custom_call.1} parent=1 // pred_check
      _
    $region71: #{tpu_custom_call.1} parent=1 // pred_check_branch
      %1178 = sbr.rel (0) target = $region73
    $region72: #{tpu_custom_call.1} parent=1 // pred_region
      %1179 = dma.done [#allocation4], 128
    $region73: #{tpu_custom_call.1} parent=1 // pred_fallthru
      _
    // Predicated region
    $region74: #{tpu_custom_call.1} parent=1 // pred_check
      _
    $region75: #{tpu_custom_call.1} parent=1 // pred_check_branch
      %1181 = sbr.rel (0) target = $region77
    $region76: #{tpu_custom_call.1} parent=1 // pred_region
      %1182 = dma.done [#allocation13], 256
    $region77: #{tpu_custom_call.1} parent=1 // pred_fallthru
      _
    %1183 = vsyncpa [#allocation3], 1
    %1184 = vsyncpa [#allocation6], 1
    %1185 = vsyncpa [#allocation9], 1
    %1186 = vsyncpa [#allocation4], 1
    %1187 = vsyncpa [#allocation13], 1

</llo_original>
